<compile_context>
chip_gen: v7x
topology: tpu7x:2x2x1
jax: 0.10.0
libtpu: 0.0.40
codegen_flags: <defaults>
</compile_context>

<pallas_src>
import jax
import jax.numpy as jnp
import numpy as np
from jax.experimental import pallas as pl
from jax.experimental.pallas import tpu as pltpu

NUM_SIGNAL = 240          # from the PyTorch module
NUM_NODES = 64            # num_nodes (undefined in source) -- chosen small
CNN_OUT = 4               # Conv1d output channels of the assumed model_CNN
C_IN = 9
H, W = 16, 15             # H * W must equal NUM_SIGNAL = 240
KH = KW = 3
K1D = 3

K_IN = C_IN * H * W       # 2160  flattened NCHW features (sublane-aligned: 135*16)
N_PAD = 128               # NUM_NODES padded to a full lane width
OUT_W = CNN_OUT * NUM_NODES  # 256  lane-dense output slab (2 * 128)


def fused_kernel(x_ref, w_ref, b_ref, m_ref, b2_ref, out_ref):
    """Fused (folded Conv2d+Linear) matmul + ReLU + (Conv1d-as-matmul) + ReLU.

    x_ref  : (B_TILE, K_IN)   bf16 VMEM  flattened NCHW input tile (no K pad)
    w_ref  : (K_IN, N_PAD)    bf16 VMEM  folded Conv2d+Linear weight (pad cols = 0)
    b_ref  : (1, N_PAD)       f32  VMEM  folded bias (pad cols = 0)
    m_ref  : (N_PAD, OUT_W)   f32  VMEM  banded Conv1d weight matrix
    b2_ref : (1, OUT_W)       f32  VMEM  Conv1d bias broadcast per channel block
    out_ref: (B_TILE, OUT_W)  f32  VMEM  lane-dense output slab
    """
    # --- Conv2d(9->1) + Linear(240->N) folded into one bf16 MXU contraction + ReLU
    x3 = jnp.dot(x_ref[...], w_ref[...], preferred_element_type=jnp.float32)
    x3 = jnp.maximum(x3 + b_ref[...], 0.0)     # (B_TILE, 128); cols >= 64 exactly 0

    # --- Conv1d(1->4, k=3, pad=1) + ReLU as a second (small, f32) MXU matmul ---
    y = jnp.dot(x3, m_ref[...], preferred_element_type=jnp.float32) + b2_ref[...]
    out_ref[...] = jnp.maximum(y, 0.0)         # (B_TILE, 4*64)


def fold_conv2d_into_fc(w2d, b2d, wfc, bfc):
    """Fold Conv2d(9->1, 3x3, pad=1) + reshape + Linear(240->N) into one Linear.

    Returns W_full (C_IN*H*W, N) and b_eff (1, N) such that
      relu(x.reshape(B, C_IN*H*W) @ W_full + b_eff) == relu(Linear(Conv2d(x))).
    """
    n_out = wfc.shape[1]
    wfc_img = wfc.reshape(H, W, n_out)                        # (H, W, N)
    wfc_pad = jnp.pad(wfc_img, ((1, 1), (1, 1), (0, 0)))      # (H+2, W+2, N)
    w_full = jnp.zeros((C_IN, H, W, n_out), jnp.float32)
    for dh in range(KH):
        for dw in range(KW):
            # W_full[c, h', w', n] += w2d[0,c,dh,dw] * wfc_img[h'-dh+1, w'-dw+1, n]
            # (zero outside bounds -- handled by the padded image).
            win = wfc_pad[2 - dh: 2 - dh + H, 2 - dw: 2 - dw + W, :]
            w_full = w_full + w2d[0, :, dh, dw][:, None, None, None] * win[None]
    w_full = w_full.reshape(C_IN * H * W, n_out)              # (2160, N)
    # Conv2d bias reaches every spatial position, then gets contracted by wfc.
    b_eff = bfc + b2d[0] * jnp.sum(wfc, axis=0, keepdims=True)  # (1, N)
    return w_full, b_eff


def build_conv1d_matmul(w1d, b1d):
    """Express Conv1d(1->CNN_OUT, k=3, pad=1) over NUM_NODES positions as a banded
    (N_PAD, CNN_OUT*NUM_NODES) matrix + bias, so it runs on the MXU.

    The zero columns (>= NUM_NODES) of x3 provide the conv's edge zero-padding
    for the j = NUM_NODES-1 tap for free; j = 0 has simply no i = -1 tap.
    """
    i_idx = jnp.arange(N_PAD)[:, None]                  # contraction index (x3 col)
    j_idx = jnp.arange(NUM_NODES)[None, :]              # output position
    blocks, biases = [], []
    for c in range(CNN_OUT):
        blk = jnp.zeros((N_PAD, NUM_NODES), jnp.float32)
        for t in range(K1D):
            tap = (i_idx == (j_idx + t - 1)).astype(jnp.float32)
            blk = blk + w1d[c, 0, t] * tap
        blocks.append(blk)
        biases.append(jnp.full((NUM_NODES,), b1d[c], jnp.float32))
    m = jnp.concatenate(blocks, axis=1)                 # (128, 4*64) = (128, 256)
    bias = jnp.concatenate(biases, axis=0)[None, :]     # (1, 256)
    return m, bias


def prepare_weights(params):
    """One-time weight folding / padding / bf16 casting (hoisted out of forward)."""
    w2d, b2d, wfc, bfc, w1d, b1d = params
    w_full, b_eff = fold_conv2d_into_fc(w2d, b2d, wfc, bfc)       # (2160, 64), (1, 64)
    w_pad = jnp.zeros((K_IN, N_PAD), jnp.float32).at[:, :NUM_NODES].set(w_full)
    b_pad = jnp.zeros((1, N_PAD), jnp.float32).at[:, :NUM_NODES].set(b_eff)
    m_band, b_cnn = build_conv1d_matmul(w1d, b1d)                 # (128, 256), (1, 256)
    # bf16 weight for the big contraction; zero pad columns stay exactly zero.
    return (w_pad.astype(jnp.bfloat16),
            b_pad,
            m_band,
            b_cnn)


def init_params(key):
    """Deterministic PyTorch-style uniform(-1/sqrt(fan_in), 1/sqrt(fan_in)) init."""
    k1, k2, k3, k4, k5, k6 = jax.random.split(key, 6)

    def u(k, shape, fan_in):
        bound = 1.0 / np.sqrt(fan_in)
        return jax.random.uniform(k, shape, jnp.float32, -bound, bound)

    w2d = u(k1, (1, C_IN, KH, KW), C_IN * KH * KW)     # Conv2d weight (O, I, kH, kW)
    b2d = u(k2, (1,), C_IN * KH * KW)                  # Conv2d bias
    wfc = u(k3, (NUM_SIGNAL, NUM_NODES), NUM_SIGNAL)   # Linear weight, stored (in, out)
    bfc = u(k4, (1, NUM_NODES), NUM_SIGNAL)            # Linear bias
    w1d = u(k5, (CNN_OUT, 1, K1D), K1D)                # Conv1d weight (O, I, k)
    b1d = u(k6, (CNN_OUT,), K1D)                       # Conv1d bias
    return (w2d, b2d, wfc, bfc, w1d, b1d)


def _round_up(v, m):
    return ((v + m - 1) // m) * m


def _choose_batch_tiling(b):
    """Sublane-aligned (bf16 -> 16) batch tiling.

    Tile capped at 256 rows (fills the v6e/v7x 256-row MXU), and for batches
    larger than one tile we force >= 2 grid steps so the 'parallel' axis can
    shard across v7x's two TensorCores.  v5e is HBM-bound here, so tile size
    beyond alignment matters little there.
    """
    align = 16
    b_pad = _round_up(b, align)
    if b_pad <= align:
        tile = b_pad
    else:
        tile = min(256, _round_up(-(-b_pad // 2), align))
    b_pad = _round_up(b_pad, tile)
    return b_pad, tile


@jax.jit
def forward(x, w_bf16, b_eff, m_band, b_cnn):
    b = x.shape[0]
    b_pad, b_tile = _choose_batch_tiling(b)

    # Flatten NCHW (free, contiguous) and cast the dominant HBM stream to bf16.
    # No K padding: 2160 is sublane-aligned and the BlockSpec uses the full dim.
    x_flat = x.reshape(b, K_IN).astype(jnp.bfloat16)
    if b_pad != b:
        x_flat = jnp.pad(x_flat, ((0, b_pad - b), (0, 0)))   # rows only, tiny

    grid = (b_pad // b_tile,)
    out = pl.pallas_call(
        fused_kernel,
        out_shape=jax.ShapeDtypeStruct((b_pad, OUT_W), jnp.float32),
        grid=grid,
        in_specs=[
            pl.BlockSpec((b_tile, K_IN), lambda i: (i, 0)),   # x tile (bf16)
            pl.BlockSpec((K_IN, N_PAD), lambda i: (0, 0)),    # folded weight (bf16)
            pl.BlockSpec((1, N_PAD), lambda i: (0, 0)),       # folded bias (f32)
            pl.BlockSpec((N_PAD, OUT_W), lambda i: (0, 0)),   # conv1d band matrix
            pl.BlockSpec((1, OUT_W), lambda i: (0, 0)),       # conv1d bias
        ],
        out_specs=pl.BlockSpec((b_tile, OUT_W), lambda i: (i, 0)),
        compiler_params=pltpu.CompilerParams(
            dimension_semantics=("parallel",)),
    )(x_flat, w_bf16, b_eff, m_band, b_cnn)

    # (b_pad, 4*64) lane-dense slab -> PyTorch (B, 4, 64); pure reshape, no slice.
    return out[:b].reshape(b, CNN_OUT, NUM_NODES)


def reference(x, params):
    """Pure-JAX reference mirroring the PyTorch forward."""
    w2d, b2d, wfc, bfc, w1d, b1d = params
    y = jax.lax.conv_general_dilated(
        x, w2d, window_strides=(1, 1), padding="SAME",
        dimension_numbers=("NCHW", "OIHW", "NCHW"),
        precision=jax.lax.Precision.HIGHEST) + b2d[0]
    x2 = y[:, 0].reshape(x.shape[0], NUM_SIGNAL)
    x3 = jax.nn.relu(jnp.dot(x2, wfc, precision=jax.lax.Precision.HIGHEST) + bfc)
    x4 = x3[:, None, :]
    y1 = jax.lax.conv_general_dilated(
        x4, w1d, window_strides=(1,), padding="SAME",
        dimension_numbers=("NCH", "OIH", "NCH"),
        precision=jax.lax.Precision.HIGHEST) + b1d[None, :, None]
    return jax.nn.relu(y1)


if __name__ == "__main__":
    key = jax.random.PRNGKey(0)
    k_param, k_x = jax.random.split(key)
    params = init_params(k_param)
    prepared = prepare_weights(params)     # folded/padded/bf16 once, outside forward
    x = jax.random.normal(k_x, (2, C_IN, H, W), dtype=jnp.float32)  # (B, 9, 16, 15)

    out = jax.block_until_ready(forward(x, *prepared))
    ref = jax.block_until_ready(reference(x, params))

    assert out.shape == (2, CNN_OUT, NUM_NODES), out.shape
    assert np.allclose(np.asarray(out), np.asarray(ref), rtol=5e-2, atol=5e-2), (
        "mismatch vs reference")

    print("KERNEL_OK")
</pallas_src>

<mosaic_0001>
module attributes {stable_mosaic.version = 11 : i64} {
  func.func @fused_kernel(%arg0: i32, %arg1: memref<16x2160xbf16, #tpu.memory_space<vmem>>, %arg2: memref<2160x128xbf16, #tpu.memory_space<vmem>>, %arg3: memref<1x128xf32, #tpu.memory_space<vmem>>, %arg4: memref<128x256xf32, #tpu.memory_space<vmem>>, %arg5: memref<1x256xf32, #tpu.memory_space<vmem>>, %arg6: memref<16x256xf32, #tpu.memory_space<vmem>>) attributes {dimension_semantics = [#tpu.dimension_semantics<parallel>], iteration_bounds = array<i64: 1>, scalar_prefetch = 0 : i64, scratch_operands = 0 : i64, tpu.core_type = #tpu.core_type<tc>, window_params = [{transform_indices = @transform_0, window_bounds = array<i64: 16, 2160>}, {pipeline_mode = #tpu.pipeline_mode<synchronous>, transform_indices = @transform_1, window_bounds = array<i64: 2160, 128>}, {pipeline_mode = #tpu.pipeline_mode<synchronous>, transform_indices = @transform_2, window_bounds = array<i64: 1, 128>}, {pipeline_mode = #tpu.pipeline_mode<synchronous>, transform_indices = @transform_3, window_bounds = array<i64: 128, 256>}, {pipeline_mode = #tpu.pipeline_mode<synchronous>, transform_indices = @transform_4, window_bounds = array<i64: 1, 256>}, {transform_indices = @transform_5, window_bounds = array<i64: 16, 256>}]} {
    %c0 = arith.constant 0 : index
    %c0_0 = arith.constant 0 : index
    %0 = vector.load %arg1[%c0, %c0_0] : memref<16x2160xbf16, #tpu.memory_space<vmem>>, vector<16x2160xbf16>
    %c0_1 = arith.constant 0 : index
    %c0_2 = arith.constant 0 : index
    %1 = vector.load %arg2[%c0_1, %c0_2] : memref<2160x128xbf16, #tpu.memory_space<vmem>>, vector<2160x128xbf16>
    %cst = arith.constant dense<0.000000e+00> : vector<16x128xf32>
    %2 = tpu.matmul %0, %1, %cst {dimension_numbers = #tpu.dot_dimension_numbers<[1], [0], [0], [1], [0, 0, 1, 1], [], []>} : vector<16x2160xbf16>, vector<2160x128xbf16>, vector<16x128xf32> -> vector<16x128xf32>
    %c0_3 = arith.constant 0 : index
    %c0_4 = arith.constant 0 : index
    %3 = vector.load %arg3[%c0_3, %c0_4] : memref<1x128xf32, #tpu.memory_space<vmem>>, vector<1x128xf32>
    %4 = vector.broadcast %3 : vector<1x128xf32> to vector<16x128xf32>
    %5 = arith.addf %2, %4 : vector<16x128xf32>
    %cst_5 = arith.constant 0.000000e+00 : f32
    %6 = vector.broadcast %cst_5 : f32 to vector<16x128xf32>
    %7 = arith.maximumf %5, %6 : vector<16x128xf32>
    %c0_6 = arith.constant 0 : index
    %c0_7 = arith.constant 0 : index
    %8 = vector.load %arg4[%c0_6, %c0_7] : memref<128x256xf32, #tpu.memory_space<vmem>>, vector<128x256xf32>
    %cst_8 = arith.constant dense<0.000000e+00> : vector<16x256xf32>
    %9 = tpu.matmul %7, %8, %cst_8 {dimension_numbers = #tpu.dot_dimension_numbers<[1], [0], [0], [1], [0, 0, 1, 1], [], []>} : vector<16x128xf32>, vector<128x256xf32>, vector<16x256xf32> -> vector<16x256xf32>
    %c0_9 = arith.constant 0 : index
    %c0_10 = arith.constant 0 : index
    %10 = vector.load %arg5[%c0_9, %c0_10] : memref<1x256xf32, #tpu.memory_space<vmem>>, vector<1x256xf32>
    %11 = vector.broadcast %10 : vector<1x256xf32> to vector<16x256xf32>
    %12 = arith.addf %9, %11 : vector<16x256xf32>
    %cst_11 = arith.constant 0.000000e+00 : f32
    %13 = vector.broadcast %cst_11 : f32 to vector<16x256xf32>
    %14 = arith.maximumf %12, %13 : vector<16x256xf32>
    %c0_12 = arith.constant 0 : index
    %c0_13 = arith.constant 0 : index
    %15 = vector.load %arg6[%c0_12, %c0_13] : memref<16x256xf32, #tpu.memory_space<vmem>>, vector<16x256xf32>
    tpu.vector_store %arg6[%c0_12, %c0_13], %14 {strides = array<i32>} : memref<16x256xf32, #tpu.memory_space<vmem>>, vector<16x256xf32>,
    return
  }
  func.func @transform_0(%arg0: i32) -> (i32, i32) {
    %c0_i32 = arith.constant 0 : i32
    %c0_i32_0 = arith.constant 0 : i32
    return %arg0, %c0_i32 : i32, i32
  }
  func.func @transform_1(%arg0: i32) -> (i32, i32) {
    %c0_i32 = arith.constant 0 : i32
    %c0_i32_0 = arith.constant 0 : i32
    %c0_i32_1 = arith.constant 0 : i32
    return %c0_i32, %c0_i32_0 : i32, i32
  }
  func.func @transform_2(%arg0: i32) -> (i32, i32) {
    %c0_i32 = arith.constant 0 : i32
    %c0_i32_0 = arith.constant 0 : i32
    %c0_i32_1 = arith.constant 0 : i32
    return %c0_i32, %c0_i32_0 : i32, i32
  }
  func.func @transform_3(%arg0: i32) -> (i32, i32) {
    %c0_i32 = arith.constant 0 : i32
    %c0_i32_0 = arith.constant 0 : i32
    %c0_i32_1 = arith.constant 0 : i32
    return %c0_i32, %c0_i32_0 : i32, i32
  }
  func.func @transform_4(%arg0: i32) -> (i32, i32) {
    %c0_i32 = arith.constant 0 : i32
    %c0_i32_0 = arith.constant 0 : i32
    %c0_i32_1 = arith.constant 0 : i32
    return %c0_i32, %c0_i32_0 : i32, i32
  }
  func.func @transform_5(%arg0: i32) -> (i32, i32) {
    %c0_i32 = arith.constant 0 : i32
    %c0_i32_0 = arith.constant 0 : i32
    return %arg0, %c0_i32 : i32, i32
  }
}

</mosaic_0001>

<llo_original>
// kernel: forward.1
$region0: #{forward.1}
  #allocation0 [shape = 'u32[]', space=smem, size = 0x4, offset = 0x4, fixed_abs, tag = 'smem constant byte address 0x4 - core index']
  #allocation1 [shape = 'u32[144,128]{1,0:T(1,128)}', space=vmem, size = 0x12000, scoped, tag = 'internal scratch']
  %s0 = inlined_call_operand.vmem [shape: bf16[16,2160], index: 0, kind: input, shape index: {}]
  %s1 = inlined_call_operand.hbm [shape: bf16[2160,128], index: 1, kind: input, shape index: {}]
  %s2 = inlined_call_operand.vmem [shape: f32[1,128], index: 2, kind: input, shape index: {}]
  %s3 = inlined_call_operand.vmem [shape: f32[128,256], index: 3, kind: input, shape index: {}]
  %s4 = inlined_call_operand.vmem [shape: f32[1,256], index: 4, kind: input, shape index: {}]
  %s5 = inlined_call_operand.vmem [shape: f32[16,256], index: 5, kind: output, shape index: {}]
  %s6 = sld [smem:[#allocation0]]
  $region34: #{forward.1} parent=0
    _
  %s8 = ssub.s32 1, %s6
  %s9 = scalar_select 0, %s8, %s6
  $region1: #{forward.1} parent=0
    #allocation2 [shape = 'u8[552960]{0}', space=vmem, size = 0x87000, scoped, tag = 'input window, operand 1, single buffered']
    #allocation3 [shape = 's32[1]{0}', space=sflag, size = 0x4, scoped, tag = 'scoped memory for forward.1']
    %10 = vsyncpa [#allocation3], 0
    // Predicated region
    $region2: #{forward.1} parent=1 // pred_check
      _
    $region3: #{forward.1} parent=1 // pred_check_branch
      %12 = sbr.rel (0) target = $region5
    $region4: #{forward.1} parent=1 // pred_region
      _
    $region5: #{forward.1} parent=1 // pred_fallthru
      _
    // Predicated region
    $region6: #{forward.1} parent=1 // pred_check
      _
    $region7: #{forward.1} parent=1 // pred_check_branch
      %14 = sbr.rel (0) target = $region9
    $region8: #{forward.1} parent=1 // pred_region
      %s16 = ssub.s32 17280, 17280
      %17 = vsyncadd [#allocation3], %s16
      %s18 = sshll.u32 [#allocation2], 4
      %s19 = int_to_ptr.vmem [resolvable:$true] %s18
      %24 = dma.hbm_to_vmem [thread:$0]  %s1, 17280, %s19, [#allocation3], 64, 64, 4
    $region9: #{forward.1} parent=1 // pred_fallthru
      _
    // Predicated region
    $region10: #{forward.1} parent=1 // pred_check
      _
    $region11: #{forward.1} parent=1 // pred_check_branch
      %26 = sbr.rel (0) target = $region13
    $region12: #{forward.1} parent=1 // pred_region
      _
    $region13: #{forward.1} parent=1 // pred_fallthru
      _
    // Predicated region
    $region14: #{forward.1} parent=1 // pred_check
      _
    $region15: #{forward.1} parent=1 // pred_check_branch
      %28 = sbr.rel (0) target = $region17
    $region16: #{forward.1} parent=1 // pred_region
      _
    $region17: #{forward.1} parent=1 // pred_fallthru
      _
    // Predicated region
    $region18: #{forward.1} parent=1 // pred_check
      _
    $region19: #{forward.1} parent=1 // pred_check_branch
      %30 = sbr.rel (0) target = $region21
    $region20: #{forward.1} parent=1 // pred_region
      _
    $region21: #{forward.1} parent=1 // pred_fallthru
      _
    // Predicated region
    $region22: #{forward.1} parent=1 // pred_check
      _
    $region23: #{forward.1} parent=1 // pred_check_branch
      %32 = sbr.rel (0) target = $region25
    $region24: #{forward.1} parent=1 // pred_region
      %33 = dma.done [#allocation3], 17280
    $region25: #{forward.1} parent=1 // pred_fallthru
      _
    %v35 = vld [vmem:[%s0] sm:$0xff]
    %v36 = vld [vmem:[%s0 + $0x8] sm:$0xff]
    %v37 = vld [vmem:[%s0 + $0x10] sm:$0xff]
    %v38 = vld [vmem:[%s0 + $0x18] sm:$0xff]
    %v39 = vld [vmem:[%s0 + $0x20] sm:$0xff]
    %v40 = vld [vmem:[%s0 + $0x28] sm:$0xff]
    %v41 = vld [vmem:[%s0 + $0x30] sm:$0xff]
    %v42 = vld [vmem:[%s0 + $0x38] sm:$0xff]
    %v43 = vld [vmem:[%s0 + $0x40] sm:$0xf]
    %v44 = vld [vmem:[%s0 + $0x44] sm:$0xff]
    %v45 = vld [vmem:[%s0 + $0x4c] sm:$0xff]
    %v46 = vld [vmem:[%s0 + $0x54] sm:$0xff]
    %v47 = vld [vmem:[%s0 + $0x5c] sm:$0xff]
    %v48 = vld [vmem:[%s0 + $0x64] sm:$0xff]
    %v49 = vld [vmem:[%s0 + $0x6c] sm:$0xff]
    %v50 = vld [vmem:[%s0 + $0x74] sm:$0xff]
    %v51 = vld [vmem:[%s0 + $0x7c] sm:$0xff]
    %v52 = vld [vmem:[%s0 + $0x84] sm:$0xf]
    %v53 = vld [vmem:[#allocation2] sm:$0xf]
    %v54 = vld [vmem:[#allocation2 + $0x4] sm:$0xf]
    %v55 = vld [vmem:[#allocation2 + $0x8] sm:$0xf]
    %v56 = vld [vmem:[#allocation2 + $0xc] sm:$0xf]
    %v57 = vld [vmem:[#allocation2 + $0x10] sm:$0xf]
    %v58 = vld [vmem:[#allocation2 + $0x14] sm:$0xf]
    %v59 = vld [vmem:[#allocation2 + $0x18] sm:$0xf]
    %v60 = vld [vmem:[#allocation2 + $0x1c] sm:$0xf]
    %v61 = vld [vmem:[#allocation2 + $0x20] sm:$0xf]
    %v62 = vld [vmem:[#allocation2 + $0x24] sm:$0xf]
    %v63 = vld [vmem:[#allocation2 + $0x28] sm:$0xf]
    %v64 = vld [vmem:[#allocation2 + $0x2c] sm:$0xf]
    %v65 = vld [vmem:[#allocation2 + $0x30] sm:$0xf]
    %v66 = vld [vmem:[#allocation2 + $0x34] sm:$0xf]
    %v67 = vld [vmem:[#allocation2 + $0x38] sm:$0xf]
    %v68 = vld [vmem:[#allocation2 + $0x3c] sm:$0xf]
    %v69 = vld [vmem:[#allocation2 + $0x40] sm:$0xf]
    %v70 = vld [vmem:[#allocation2 + $0x44] sm:$0xf]
    %v71 = vld [vmem:[#allocation2 + $0x48] sm:$0xf]
    %v72 = vld [vmem:[#allocation2 + $0x4c] sm:$0xf]
    %v73 = vld [vmem:[#allocation2 + $0x50] sm:$0xf]
    %v74 = vld [vmem:[#allocation2 + $0x54] sm:$0xf]
    %v75 = vld [vmem:[#allocation2 + $0x58] sm:$0xf]
    %v76 = vld [vmem:[#allocation2 + $0x5c] sm:$0xf]
    %v77 = vld [vmem:[#allocation2 + $0x60] sm:$0xf]
    %v78 = vld [vmem:[#allocation2 + $0x64] sm:$0xf]
    %v79 = vld [vmem:[#allocation2 + $0x68] sm:$0xf]
    %v80 = vld [vmem:[#allocation2 + $0x6c] sm:$0xf]
    %v81 = vld [vmem:[#allocation2 + $0x70] sm:$0xf]
    %v82 = vld [vmem:[#allocation2 + $0x74] sm:$0xf]
    %v83 = vld [vmem:[#allocation2 + $0x78] sm:$0xf]
    %v84 = vld [vmem:[#allocation2 + $0x7c] sm:$0xf]
    %v85 = vld [vmem:[#allocation2 + $0x80] sm:$0xf]
    %v86 = vld [vmem:[#allocation2 + $0x84] sm:$0xf]
    %v87 = vld [vmem:[#allocation2 + $0x88] sm:$0xf]
    %v88 = vld [vmem:[#allocation2 + $0x8c] sm:$0xf]
    %v89 = vld [vmem:[#allocation2 + $0x90] sm:$0xf]
    %v90 = vld [vmem:[#allocation2 + $0x94] sm:$0xf]
    %v91 = vld [vmem:[#allocation2 + $0x98] sm:$0xf]
    %v92 = vld [vmem:[#allocation2 + $0x9c] sm:$0xf]
    %v93 = vld [vmem:[#allocation2 + $0xa0] sm:$0xf]
    %v94 = vld [vmem:[#allocation2 + $0xa4] sm:$0xf]
    %v95 = vld [vmem:[#allocation2 + $0xa8] sm:$0xf]
    %v96 = vld [vmem:[#allocation2 + $0xac] sm:$0xf]
    %v97 = vld [vmem:[#allocation2 + $0xb0] sm:$0xf]
    %v98 = vld [vmem:[#allocation2 + $0xb4] sm:$0xf]
    %v99 = vld [vmem:[#allocation2 + $0xb8] sm:$0xf]
    %v100 = vld [vmem:[#allocation2 + $0xbc] sm:$0xf]
    %v101 = vld [vmem:[#allocation2 + $0xc0] sm:$0xf]
    %v102 = vld [vmem:[#allocation2 + $0xc4] sm:$0xf]
    %v103 = vld [vmem:[#allocation2 + $0xc8] sm:$0xf]
    %v104 = vld [vmem:[#allocation2 + $0xcc] sm:$0xf]
    %v105 = vld [vmem:[#allocation2 + $0xd0] sm:$0xf]
    %v106 = vld [vmem:[#allocation2 + $0xd4] sm:$0xf]
    %v107 = vld [vmem:[#allocation2 + $0xd8] sm:$0xf]
    %v108 = vld [vmem:[#allocation2 + $0xdc] sm:$0xf]
    %v109 = vld [vmem:[#allocation2 + $0xe0] sm:$0xf]
    %v110 = vld [vmem:[#allocation2 + $0xe4] sm:$0xf]
    %v111 = vld [vmem:[#allocation2 + $0xe8] sm:$0xf]
    %v112 = vld [vmem:[#allocation2 + $0xec] sm:$0xf]
    %v113 = vld [vmem:[#allocation2 + $0xf0] sm:$0xf]
    %v114 = vld [vmem:[#allocation2 + $0xf4] sm:$0xf]
    %v115 = vld [vmem:[#allocation2 + $0xf8] sm:$0xf]
    %v116 = vld [vmem:[#allocation2 + $0xfc] sm:$0xf]
    %v117 = vld [vmem:[#allocation2 + $0x100] sm:$0xf]
    %v118 = vld [vmem:[#allocation2 + $0x104] sm:$0xf]
    %v119 = vld [vmem:[#allocation2 + $0x108] sm:$0xf]
    %v120 = vld [vmem:[#allocation2 + $0x10c] sm:$0xf]
    %v121 = vld [vmem:[#allocation2 + $0x110] sm:$0xf]
    %v122 = vld [vmem:[#allocation2 + $0x114] sm:$0xf]
    %v123 = vld [vmem:[#allocation2 + $0x118] sm:$0xf]
    %v124 = vld [vmem:[#allocation2 + $0x11c] sm:$0xf]
    %v125 = vld [vmem:[#allocation2 + $0x120] sm:$0xf]
    %v126 = vld [vmem:[#allocation2 + $0x124] sm:$0xf]
    %v127 = vld [vmem:[#allocation2 + $0x128] sm:$0xf]
    %v128 = vld [vmem:[#allocation2 + $0x12c] sm:$0xf]
    %v129 = vld [vmem:[#allocation2 + $0x130] sm:$0xf]
    %v130 = vld [vmem:[#allocation2 + $0x134] sm:$0xf]
    %v131 = vld [vmem:[#allocation2 + $0x138] sm:$0xf]
    %v132 = vld [vmem:[#allocation2 + $0x13c] sm:$0xf]
    %v133 = vld [vmem:[#allocation2 + $0x140] sm:$0xf]
    %v134 = vld [vmem:[#allocation2 + $0x144] sm:$0xf]
    %v135 = vld [vmem:[#allocation2 + $0x148] sm:$0xf]
    %v136 = vld [vmem:[#allocation2 + $0x14c] sm:$0xf]
    %v137 = vld [vmem:[#allocation2 + $0x150] sm:$0xf]
    %v138 = vld [vmem:[#allocation2 + $0x154] sm:$0xf]
    %v139 = vld [vmem:[#allocation2 + $0x158] sm:$0xf]
    %v140 = vld [vmem:[#allocation2 + $0x15c] sm:$0xf]
    %v141 = vld [vmem:[#allocation2 + $0x160] sm:$0xf]
    %v142 = vld [vmem:[#allocation2 + $0x164] sm:$0xf]
    %v143 = vld [vmem:[#allocation2 + $0x168] sm:$0xf]
    %v144 = vld [vmem:[#allocation2 + $0x16c] sm:$0xf]
    %v145 = vld [vmem:[#allocation2 + $0x170] sm:$0xf]
    %v146 = vld [vmem:[#allocation2 + $0x174] sm:$0xf]
    %v147 = vld [vmem:[#allocation2 + $0x178] sm:$0xf]
    %v148 = vld [vmem:[#allocation2 + $0x17c] sm:$0xf]
    %v149 = vld [vmem:[#allocation2 + $0x180] sm:$0xf]
    %v150 = vld [vmem:[#allocation2 + $0x184] sm:$0xf]
    %v151 = vld [vmem:[#allocation2 + $0x188] sm:$0xf]
    %v152 = vld [vmem:[#allocation2 + $0x18c] sm:$0xf]
    %v153 = vld [vmem:[#allocation2 + $0x190] sm:$0xf]
    %v154 = vld [vmem:[#allocation2 + $0x194] sm:$0xf]
    %v155 = vld [vmem:[#allocation2 + $0x198] sm:$0xf]
    %v156 = vld [vmem:[#allocation2 + $0x19c] sm:$0xf]
    %v157 = vld [vmem:[#allocation2 + $0x1a0] sm:$0xf]
    %v158 = vld [vmem:[#allocation2 + $0x1a4] sm:$0xf]
    %v159 = vld [vmem:[#allocation2 + $0x1a8] sm:$0xf]
    %v160 = vld [vmem:[#allocation2 + $0x1ac] sm:$0xf]
    %v161 = vld [vmem:[#allocation2 + $0x1b0] sm:$0xf]
    %v162 = vld [vmem:[#allocation2 + $0x1b4] sm:$0xf]
    %v163 = vld [vmem:[#allocation2 + $0x1b8] sm:$0xf]
    %v164 = vld [vmem:[#allocation2 + $0x1bc] sm:$0xf]
    %v165 = vld [vmem:[#allocation2 + $0x1c0] sm:$0xf]
    %v166 = vld [vmem:[#allocation2 + $0x1c4] sm:$0xf]
    %v167 = vld [vmem:[#allocation2 + $0x1c8] sm:$0xf]
    %v168 = vld [vmem:[#allocation2 + $0x1cc] sm:$0xf]
    %v169 = vld [vmem:[#allocation2 + $0x1d0] sm:$0xf]
    %v170 = vld [vmem:[#allocation2 + $0x1d4] sm:$0xf]
    %v171 = vld [vmem:[#allocation2 + $0x1d8] sm:$0xf]
    %v172 = vld [vmem:[#allocation2 + $0x1dc] sm:$0xf]
    %v173 = vld [vmem:[#allocation2 + $0x1e0] sm:$0xf]
    %v174 = vld [vmem:[#allocation2 + $0x1e4] sm:$0xf]
    %v175 = vld [vmem:[#allocation2 + $0x1e8] sm:$0xf]
    %v176 = vld [vmem:[#allocation2 + $0x1ec] sm:$0xf]
    %v177 = vld [vmem:[#allocation2 + $0x1f0] sm:$0xf]
    %v178 = vld [vmem:[#allocation2 + $0x1f4] sm:$0xf]
    %v179 = vld [vmem:[#allocation2 + $0x1f8] sm:$0xf]
    %v180 = vld [vmem:[#allocation2 + $0x1fc] sm:$0xf]
    %v181 = vld [vmem:[#allocation2 + $0x200] sm:$0xf]
    %v182 = vld [vmem:[#allocation2 + $0x204] sm:$0xf]
    %v183 = vld [vmem:[#allocation2 + $0x208] sm:$0xf]
    %v184 = vld [vmem:[#allocation2 + $0x20c] sm:$0xf]
    %v185 = vld [vmem:[#allocation2 + $0x210] sm:$0xf]
    %v186 = vld [vmem:[#allocation2 + $0x214] sm:$0xf]
    %v187 = vld [vmem:[#allocation2 + $0x218] sm:$0xf]
    %v188 = vld [vmem:[#allocation2 + $0x21c] sm:$0xf]
    %v189 = vld [vmem:[#allocation2 + $0x220] sm:$0xf]
    %v190 = vld [vmem:[#allocation2 + $0x224] sm:$0xf]
    %v191 = vld [vmem:[#allocation2 + $0x228] sm:$0xf]
    %v192 = vld [vmem:[#allocation2 + $0x22c] sm:$0xf]
    %v193 = vld [vmem:[#allocation2 + $0x230] sm:$0xf]
    %v194 = vld [vmem:[#allocation2 + $0x234] sm:$0xf]
    %v195 = vld [vmem:[#allocation2 + $0x238] sm:$0xf]
    %v196 = vld [vmem:[#allocation2 + $0x23c] sm:$0xf]
    %v197 = vld [vmem:[#allocation2 + $0x240] sm:$0xf]
    %v198 = vld [vmem:[#allocation2 + $0x244] sm:$0xf]
    %v199 = vld [vmem:[#allocation2 + $0x248] sm:$0xf]
    %v200 = vld [vmem:[#allocation2 + $0x24c] sm:$0xf]
    %v201 = vld [vmem:[#allocation2 + $0x250] sm:$0xf]
    %v202 = vld [vmem:[#allocation2 + $0x254] sm:$0xf]
    %v203 = vld [vmem:[#allocation2 + $0x258] sm:$0xf]
    %v204 = vld [vmem:[#allocation2 + $0x25c] sm:$0xf]
    %v205 = vld [vmem:[#allocation2 + $0x260] sm:$0xf]
    %v206 = vld [vmem:[#allocation2 + $0x264] sm:$0xf]
    %v207 = vld [vmem:[#allocation2 + $0x268] sm:$0xf]
    %v208 = vld [vmem:[#allocation2 + $0x26c] sm:$0xf]
    %v209 = vld [vmem:[#allocation2 + $0x270] sm:$0xf]
    %v210 = vld [vmem:[#allocation2 + $0x274] sm:$0xf]
    %v211 = vld [vmem:[#allocation2 + $0x278] sm:$0xf]
    %v212 = vld [vmem:[#allocation2 + $0x27c] sm:$0xf]
    %v213 = vld [vmem:[#allocation2 + $0x280] sm:$0xf]
    %v214 = vld [vmem:[#allocation2 + $0x284] sm:$0xf]
    %v215 = vld [vmem:[#allocation2 + $0x288] sm:$0xf]
    %v216 = vld [vmem:[#allocation2 + $0x28c] sm:$0xf]
    %v217 = vld [vmem:[#allocation2 + $0x290] sm:$0xf]
    %v218 = vld [vmem:[#allocation2 + $0x294] sm:$0xf]
    %v219 = vld [vmem:[#allocation2 + $0x298] sm:$0xf]
    %v220 = vld [vmem:[#allocation2 + $0x29c] sm:$0xf]
    %v221 = vld [vmem:[#allocation2 + $0x2a0] sm:$0xf]
    %v222 = vld [vmem:[#allocation2 + $0x2a4] sm:$0xf]
    %v223 = vld [vmem:[#allocation2 + $0x2a8] sm:$0xf]
    %v224 = vld [vmem:[#allocation2 + $0x2ac] sm:$0xf]
    %v225 = vld [vmem:[#allocation2 + $0x2b0] sm:$0xf]
    %v226 = vld [vmem:[#allocation2 + $0x2b4] sm:$0xf]
    %v227 = vld [vmem:[#allocation2 + $0x2b8] sm:$0xf]
    %v228 = vld [vmem:[#allocation2 + $0x2bc] sm:$0xf]
    %v229 = vld [vmem:[#allocation2 + $0x2c0] sm:$0xf]
    %v230 = vld [vmem:[#allocation2 + $0x2c4] sm:$0xf]
    %v231 = vld [vmem:[#allocation2 + $0x2c8] sm:$0xf]
    %v232 = vld [vmem:[#allocation2 + $0x2cc] sm:$0xf]
    %v233 = vld [vmem:[#allocation2 + $0x2d0] sm:$0xf]
    %v234 = vld [vmem:[#allocation2 + $0x2d4] sm:$0xf]
    %v235 = vld [vmem:[#allocation2 + $0x2d8] sm:$0xf]
    %v236 = vld [vmem:[#allocation2 + $0x2dc] sm:$0xf]
    %v237 = vld [vmem:[#allocation2 + $0x2e0] sm:$0xf]
    %v238 = vld [vmem:[#allocation2 + $0x2e4] sm:$0xf]
    %v239 = vld [vmem:[#allocation2 + $0x2e8] sm:$0xf]
    %v240 = vld [vmem:[#allocation2 + $0x2ec] sm:$0xf]
    %v241 = vld [vmem:[#allocation2 + $0x2f0] sm:$0xf]
    %v242 = vld [vmem:[#allocation2 + $0x2f4] sm:$0xf]
    %v243 = vld [vmem:[#allocation2 + $0x2f8] sm:$0xf]
    %v244 = vld [vmem:[#allocation2 + $0x2fc] sm:$0xf]
    %v245 = vld [vmem:[#allocation2 + $0x300] sm:$0xf]
    %v246 = vld [vmem:[#allocation2 + $0x304] sm:$0xf]
    %v247 = vld [vmem:[#allocation2 + $0x308] sm:$0xf]
    %v248 = vld [vmem:[#allocation2 + $0x30c] sm:$0xf]
    %v249 = vld [vmem:[#allocation2 + $0x310] sm:$0xf]
    %v250 = vld [vmem:[#allocation2 + $0x314] sm:$0xf]
    %v251 = vld [vmem:[#allocation2 + $0x318] sm:$0xf]
    %v252 = vld [vmem:[#allocation2 + $0x31c] sm:$0xf]
    %v253 = vld [vmem:[#allocation2 + $0x320] sm:$0xf]
    %v254 = vld [vmem:[#allocation2 + $0x324] sm:$0xf]
    %v255 = vld [vmem:[#allocation2 + $0x328] sm:$0xf]
    %v256 = vld [vmem:[#allocation2 + $0x32c] sm:$0xf]
    %v257 = vld [vmem:[#allocation2 + $0x330] sm:$0xf]
    %v258 = vld [vmem:[#allocation2 + $0x334] sm:$0xf]
    %v259 = vld [vmem:[#allocation2 + $0x338] sm:$0xf]
    %v260 = vld [vmem:[#allocation2 + $0x33c] sm:$0xf]
    %v261 = vld [vmem:[#allocation2 + $0x340] sm:$0xf]
    %v262 = vld [vmem:[#allocation2 + $0x344] sm:$0xf]
    %v263 = vld [vmem:[#allocation2 + $0x348] sm:$0xf]
    %v264 = vld [vmem:[#allocation2 + $0x34c] sm:$0xf]
    %v265 = vld [vmem:[#allocation2 + $0x350] sm:$0xf]
    %v266 = vld [vmem:[#allocation2 + $0x354] sm:$0xf]
    %v267 = vld [vmem:[#allocation2 + $0x358] sm:$0xf]
    %v268 = vld [vmem:[#allocation2 + $0x35c] sm:$0xf]
    %v269 = vld [vmem:[#allocation2 + $0x360] sm:$0xf]
    %v270 = vld [vmem:[#allocation2 + $0x364] sm:$0xf]
    %v271 = vld [vmem:[#allocation2 + $0x368] sm:$0xf]
    %v272 = vld [vmem:[#allocation2 + $0x36c] sm:$0xf]
    %v273 = vld [vmem:[#allocation2 + $0x370] sm:$0xf]
    %v274 = vld [vmem:[#allocation2 + $0x374] sm:$0xf]
    %v275 = vld [vmem:[#allocation2 + $0x378] sm:$0xf]
    %v276 = vld [vmem:[#allocation2 + $0x37c] sm:$0xf]
    %v277 = vld [vmem:[#allocation2 + $0x380] sm:$0xf]
    %v278 = vld [vmem:[#allocation2 + $0x384] sm:$0xf]
    %v279 = vld [vmem:[#allocation2 + $0x388] sm:$0xf]
    %v280 = vld [vmem:[#allocation2 + $0x38c] sm:$0xf]
    %v281 = vld [vmem:[#allocation2 + $0x390] sm:$0xf]
    %v282 = vld [vmem:[#allocation2 + $0x394] sm:$0xf]
    %v283 = vld [vmem:[#allocation2 + $0x398] sm:$0xf]
    %v284 = vld [vmem:[#allocation2 + $0x39c] sm:$0xf]
    %v285 = vld [vmem:[#allocation2 + $0x3a0] sm:$0xf]
    %v286 = vld [vmem:[#allocation2 + $0x3a4] sm:$0xf]
    %v287 = vld [vmem:[#allocation2 + $0x3a8] sm:$0xf]
    %v288 = vld [vmem:[#allocation2 + $0x3ac] sm:$0xf]
    %v289 = vld [vmem:[#allocation2 + $0x3b0] sm:$0xf]
    %v290 = vld [vmem:[#allocation2 + $0x3b4] sm:$0xf]
    %v291 = vld [vmem:[#allocation2 + $0x3b8] sm:$0xf]
    %v292 = vld [vmem:[#allocation2 + $0x3bc] sm:$0xf]
    %v293 = vld [vmem:[#allocation2 + $0x3c0] sm:$0xf]
    %v294 = vld [vmem:[#allocation2 + $0x3c4] sm:$0xf]
    %v295 = vld [vmem:[#allocation2 + $0x3c8] sm:$0xf]
    %v296 = vld [vmem:[#allocation2 + $0x3cc] sm:$0xf]
    %v297 = vld [vmem:[#allocation2 + $0x3d0] sm:$0xf]
    %v298 = vld [vmem:[#allocation2 + $0x3d4] sm:$0xf]
    %v299 = vld [vmem:[#allocation2 + $0x3d8] sm:$0xf]
    %v300 = vld [vmem:[#allocation2 + $0x3dc] sm:$0xf]
    %v301 = vld [vmem:[#allocation2 + $0x3e0] sm:$0xf]
    %v302 = vld [vmem:[#allocation2 + $0x3e4] sm:$0xf]
    %v303 = vld [vmem:[#allocation2 + $0x3e8] sm:$0xf]
    %v304 = vld [vmem:[#allocation2 + $0x3ec] sm:$0xf]
    %v305 = vld [vmem:[#allocation2 + $0x3f0] sm:$0xf]
    %v306 = vld [vmem:[#allocation2 + $0x3f4] sm:$0xf]
    %v307 = vld [vmem:[#allocation2 + $0x3f8] sm:$0xf]
    %v308 = vld [vmem:[#allocation2 + $0x3fc] sm:$0xf]
    %v309 = vld [vmem:[#allocation2 + $0x400] sm:$0xf]
    %v310 = vld [vmem:[#allocation2 + $0x404] sm:$0xf]
    %v311 = vld [vmem:[#allocation2 + $0x408] sm:$0xf]
    %v312 = vld [vmem:[#allocation2 + $0x40c] sm:$0xf]
    %v313 = vld [vmem:[#allocation2 + $0x410] sm:$0xf]
    %v314 = vld [vmem:[#allocation2 + $0x414] sm:$0xf]
    %v315 = vld [vmem:[#allocation2 + $0x418] sm:$0xf]
    %v316 = vld [vmem:[#allocation2 + $0x41c] sm:$0xf]
    %v317 = vld [vmem:[#allocation2 + $0x420] sm:$0xf]
    %v318 = vld [vmem:[#allocation2 + $0x424] sm:$0xf]
    %v319 = vld [vmem:[#allocation2 + $0x428] sm:$0xf]
    %v320 = vld [vmem:[#allocation2 + $0x42c] sm:$0xf]
    %v321 = vld [vmem:[#allocation2 + $0x430] sm:$0xf]
    %v322 = vld [vmem:[#allocation2 + $0x434] sm:$0xf]
    %v323 = vld [vmem:[%s2] sm:$0x1]
    %v325 = vlaneseq
    %v326 = vshrl.u32 %v325, 7
    %v327 = vsub.s32 0, %v326
    %v328 = vrot.slane %v323, %v327
    %v348 = vunpack.c.l.b16 %v35
    %v349 = vunpack.c.h.b16 %v35
    %v350 = vunpack.c.l.b16 %v36
    %v351 = vunpack.c.h.b16 %v36
    %v352 = vunpack.c.l.b16 %v37
    %v353 = vunpack.c.h.b16 %v37
    %v354 = vunpack.c.l.b16 %v38
    %v355 = vunpack.c.h.b16 %v38
    %v356 = vunpack.c.l.b16 %v39
    %v357 = vunpack.c.h.b16 %v39
    %v358 = vunpack.c.l.b16 %v40
    %v359 = vunpack.c.h.b16 %v40
    %v360 = vunpack.c.l.b16 %v41
    %v361 = vunpack.c.h.b16 %v41
    %v362 = vunpack.c.l.b16 %v42
    %v363 = vunpack.c.h.b16 %v42
    %v364 = vunpack.c.l.b16 %v43
    %v365 = vunpack.c.l.b16 %v44
    %v366 = vunpack.c.h.b16 %v44
    %v367 = vunpack.c.l.b16 %v45
    %v368 = vunpack.c.h.b16 %v45
    %v369 = vunpack.c.l.b16 %v46
    %v370 = vunpack.c.h.b16 %v46
    %v371 = vunpack.c.l.b16 %v47
    %v372 = vunpack.c.h.b16 %v47
    %v373 = vunpack.c.l.b16 %v48
    %v374 = vunpack.c.h.b16 %v48
    %v375 = vunpack.c.l.b16 %v49
    %v376 = vunpack.c.h.b16 %v49
    %v377 = vunpack.c.l.b16 %v50
    %v378 = vunpack.c.h.b16 %v50
    %v379 = vunpack.c.l.b16 %v51
    %v380 = vunpack.c.h.b16 %v51
    %v381 = vunpack.c.l.b16 %v52
    %v382 = vpack.c.b16 %v365, %v348
    %v383 = vpack.c.b16 %v366, %v349
    %v384 = vpack.c.b16 %v367, %v350
    %v385 = vpack.c.b16 %v368, %v351
    %v386 = vpack.c.b16 %v369, %v352
    %v387 = vpack.c.b16 %v370, %v353
    %v388 = vpack.c.b16 %v371, %v354
    %v389 = vpack.c.b16 %v372, %v355
    %v390 = vpack.c.b16 %v373, %v356
    %v391 = vpack.c.b16 %v374, %v357
    %v392 = vpack.c.b16 %v375, %v358
    %v393 = vpack.c.b16 %v376, %v359
    %v394 = vpack.c.b16 %v377, %v360
    %v395 = vpack.c.b16 %v378, %v361
    %v396 = vpack.c.b16 %v379, %v362
    %v397 = vpack.c.b16 %v380, %v363
    %v398 = vpack.c.b16 %v381, %v364
    %v685 = vunpack.c.l.b16 %v53
    %v686 = vunpack.c.l.b16 %v54
    %v687 = vunpack.c.l.b16 %v55
    %v688 = vunpack.c.l.b16 %v56
    %v689 = vunpack.c.l.b16 %v57
    %v690 = vunpack.c.l.b16 %v58
    %v691 = vunpack.c.l.b16 %v59
    %v692 = vunpack.c.l.b16 %v60
    %v693 = vunpack.c.l.b16 %v61
    %v694 = vunpack.c.l.b16 %v62
    %v695 = vunpack.c.l.b16 %v63
    %v696 = vunpack.c.l.b16 %v64
    %v697 = vunpack.c.l.b16 %v65
    %v698 = vunpack.c.l.b16 %v66
    %v699 = vunpack.c.l.b16 %v67
    %v700 = vunpack.c.l.b16 %v68
    %v701 = vunpack.c.l.b16 %v69
    %v702 = vunpack.c.l.b16 %v70
    %v703 = vunpack.c.l.b16 %v71
    %v704 = vunpack.c.l.b16 %v72
    %v705 = vunpack.c.l.b16 %v73
    %v706 = vunpack.c.l.b16 %v74
    %v707 = vunpack.c.l.b16 %v75
    %v708 = vunpack.c.l.b16 %v76
    %v709 = vunpack.c.l.b16 %v77
    %v710 = vunpack.c.l.b16 %v78
    %v711 = vunpack.c.l.b16 %v79
    %v712 = vunpack.c.l.b16 %v80
    %v713 = vunpack.c.l.b16 %v81
    %v714 = vunpack.c.l.b16 %v82
    %v715 = vunpack.c.l.b16 %v83
    %v716 = vunpack.c.l.b16 %v84
    %v717 = vunpack.c.l.b16 %v85
    %v718 = vunpack.c.l.b16 %v86
    %v719 = vunpack.c.l.b16 %v87
    %v720 = vunpack.c.l.b16 %v88
    %v721 = vunpack.c.l.b16 %v89
    %v722 = vunpack.c.l.b16 %v90
    %v723 = vunpack.c.l.b16 %v91
    %v724 = vunpack.c.l.b16 %v92
    %v725 = vunpack.c.l.b16 %v93
    %v726 = vunpack.c.l.b16 %v94
    %v727 = vunpack.c.l.b16 %v95
    %v728 = vunpack.c.l.b16 %v96
    %v729 = vunpack.c.l.b16 %v97
    %v730 = vunpack.c.l.b16 %v98
    %v731 = vunpack.c.l.b16 %v99
    %v732 = vunpack.c.l.b16 %v100
    %v733 = vunpack.c.l.b16 %v101
    %v734 = vunpack.c.l.b16 %v102
    %v735 = vunpack.c.l.b16 %v103
    %v736 = vunpack.c.l.b16 %v104
    %v737 = vunpack.c.l.b16 %v105
    %v738 = vunpack.c.l.b16 %v106
    %v739 = vunpack.c.l.b16 %v107
    %v740 = vunpack.c.l.b16 %v108
    %v741 = vunpack.c.l.b16 %v109
    %v742 = vunpack.c.l.b16 %v110
    %v743 = vunpack.c.l.b16 %v111
    %v744 = vunpack.c.l.b16 %v112
    %v745 = vunpack.c.l.b16 %v113
    %v746 = vunpack.c.l.b16 %v114
    %v747 = vunpack.c.l.b16 %v115
    %v748 = vunpack.c.l.b16 %v116
    %v749 = vunpack.c.l.b16 %v117
    %v750 = vunpack.c.l.b16 %v118
    %v751 = vunpack.c.l.b16 %v119
    %v752 = vunpack.c.l.b16 %v120
    %v753 = vunpack.c.l.b16 %v121
    %v754 = vunpack.c.l.b16 %v122
    %v755 = vunpack.c.l.b16 %v123
    %v756 = vunpack.c.l.b16 %v124
    %v757 = vunpack.c.l.b16 %v125
    %v758 = vunpack.c.l.b16 %v126
    %v759 = vunpack.c.l.b16 %v127
    %v760 = vunpack.c.l.b16 %v128
    %v761 = vunpack.c.l.b16 %v129
    %v762 = vunpack.c.l.b16 %v130
    %v763 = vunpack.c.l.b16 %v131
    %v764 = vunpack.c.l.b16 %v132
    %v765 = vunpack.c.l.b16 %v133
    %v766 = vunpack.c.l.b16 %v134
    %v767 = vunpack.c.l.b16 %v135
    %v768 = vunpack.c.l.b16 %v136
    %v769 = vunpack.c.l.b16 %v137
    %v770 = vunpack.c.l.b16 %v138
    %v771 = vunpack.c.l.b16 %v139
    %v772 = vunpack.c.l.b16 %v140
    %v773 = vunpack.c.l.b16 %v141
    %v774 = vunpack.c.l.b16 %v142
    %v775 = vunpack.c.l.b16 %v143
    %v776 = vunpack.c.l.b16 %v144
    %v777 = vunpack.c.l.b16 %v145
    %v778 = vunpack.c.l.b16 %v146
    %v779 = vunpack.c.l.b16 %v147
    %v780 = vunpack.c.l.b16 %v148
    %v781 = vunpack.c.l.b16 %v149
    %v782 = vunpack.c.l.b16 %v150
    %v783 = vunpack.c.l.b16 %v151
    %v784 = vunpack.c.l.b16 %v152
    %v785 = vunpack.c.l.b16 %v153
    %v786 = vunpack.c.l.b16 %v154
    %v787 = vunpack.c.l.b16 %v155
    %v788 = vunpack.c.l.b16 %v156
    %v789 = vunpack.c.l.b16 %v157
    %v790 = vunpack.c.l.b16 %v158
    %v791 = vunpack.c.l.b16 %v159
    %v792 = vunpack.c.l.b16 %v160
    %v793 = vunpack.c.l.b16 %v161
    %v794 = vunpack.c.l.b16 %v162
    %v795 = vunpack.c.l.b16 %v163
    %v796 = vunpack.c.l.b16 %v164
    %v797 = vunpack.c.l.b16 %v165
    %v798 = vunpack.c.l.b16 %v166
    %v799 = vunpack.c.l.b16 %v167
    %v800 = vunpack.c.l.b16 %v168
    %v801 = vunpack.c.l.b16 %v169
    %v802 = vunpack.c.l.b16 %v170
    %v803 = vunpack.c.l.b16 %v171
    %v804 = vunpack.c.l.b16 %v172
    %v805 = vunpack.c.l.b16 %v173
    %v806 = vunpack.c.l.b16 %v174
    %v807 = vunpack.c.l.b16 %v175
    %v808 = vunpack.c.l.b16 %v176
    %v809 = vunpack.c.l.b16 %v177
    %v810 = vunpack.c.l.b16 %v178
    %v811 = vunpack.c.l.b16 %v179
    %v812 = vunpack.c.l.b16 %v180
    %v813 = vunpack.c.l.b16 %v181
    %v814 = vunpack.c.l.b16 %v182
    %v815 = vunpack.c.l.b16 %v183
    %v816 = vunpack.c.l.b16 %v184
    %v817 = vunpack.c.l.b16 %v185
    %v818 = vunpack.c.l.b16 %v186
    %v819 = vunpack.c.l.b16 %v187
    %v820 = vunpack.c.l.b16 %v188
    %v821 = vunpack.c.l.b16 %v189
    %v822 = vunpack.c.l.b16 %v190
    %v823 = vunpack.c.l.b16 %v191
    %v824 = vunpack.c.l.b16 %v192
    %v825 = vunpack.c.l.b16 %v193
    %v826 = vunpack.c.l.b16 %v194
    %v827 = vunpack.c.l.b16 %v195
    %v828 = vunpack.c.l.b16 %v196
    %v829 = vunpack.c.l.b16 %v197
    %v830 = vunpack.c.l.b16 %v198
    %v831 = vunpack.c.l.b16 %v199
    %v832 = vunpack.c.l.b16 %v200
    %v833 = vunpack.c.l.b16 %v201
    %v834 = vunpack.c.l.b16 %v202
    %v835 = vunpack.c.l.b16 %v203
    %v836 = vunpack.c.l.b16 %v204
    %v837 = vunpack.c.l.b16 %v205
    %v838 = vunpack.c.l.b16 %v206
    %v839 = vunpack.c.l.b16 %v207
    %v840 = vunpack.c.l.b16 %v208
    %v841 = vunpack.c.l.b16 %v209
    %v842 = vunpack.c.l.b16 %v210
    %v843 = vunpack.c.l.b16 %v211
    %v844 = vunpack.c.l.b16 %v212
    %v845 = vunpack.c.l.b16 %v213
    %v846 = vunpack.c.l.b16 %v214
    %v847 = vunpack.c.l.b16 %v215
    %v848 = vunpack.c.l.b16 %v216
    %v849 = vunpack.c.l.b16 %v217
    %v850 = vunpack.c.l.b16 %v218
    %v851 = vunpack.c.l.b16 %v219
    %v852 = vunpack.c.l.b16 %v220
    %v853 = vunpack.c.l.b16 %v221
    %v854 = vunpack.c.l.b16 %v222
    %v855 = vunpack.c.l.b16 %v223
    %v856 = vunpack.c.l.b16 %v224
    %v857 = vunpack.c.l.b16 %v225
    %v858 = vunpack.c.l.b16 %v226
    %v859 = vunpack.c.l.b16 %v227
    %v860 = vunpack.c.l.b16 %v228
    %v861 = vunpack.c.l.b16 %v229
    %v862 = vunpack.c.l.b16 %v230
    %v863 = vunpack.c.l.b16 %v231
    %v864 = vunpack.c.l.b16 %v232
    %v865 = vunpack.c.l.b16 %v233
    %v866 = vunpack.c.l.b16 %v234
    %v867 = vunpack.c.l.b16 %v235
    %v868 = vunpack.c.l.b16 %v236
    %v869 = vunpack.c.l.b16 %v237
    %v870 = vunpack.c.l.b16 %v238
    %v871 = vunpack.c.l.b16 %v239
    %v872 = vunpack.c.l.b16 %v240
    %v873 = vunpack.c.l.b16 %v241
    %v874 = vunpack.c.l.b16 %v242
    %v875 = vunpack.c.l.b16 %v243
    %v876 = vunpack.c.l.b16 %v244
    %v877 = vunpack.c.l.b16 %v245
    %v878 = vunpack.c.l.b16 %v246
    %v879 = vunpack.c.l.b16 %v247
    %v880 = vunpack.c.l.b16 %v248
    %v881 = vunpack.c.l.b16 %v249
    %v882 = vunpack.c.l.b16 %v250
    %v883 = vunpack.c.l.b16 %v251
    %v884 = vunpack.c.l.b16 %v252
    %v885 = vunpack.c.l.b16 %v253
    %v886 = vunpack.c.l.b16 %v254
    %v887 = vunpack.c.l.b16 %v255
    %v888 = vunpack.c.l.b16 %v256
    %v889 = vunpack.c.l.b16 %v257
    %v890 = vunpack.c.l.b16 %v258
    %v891 = vunpack.c.l.b16 %v259
    %v892 = vunpack.c.l.b16 %v260
    %v893 = vunpack.c.l.b16 %v261
    %v894 = vunpack.c.l.b16 %v262
    %v895 = vunpack.c.l.b16 %v263
    %v896 = vunpack.c.l.b16 %v264
    %v897 = vunpack.c.l.b16 %v265
    %v898 = vunpack.c.l.b16 %v266
    %v899 = vunpack.c.l.b16 %v267
    %v900 = vunpack.c.l.b16 %v268
    %v901 = vunpack.c.l.b16 %v269
    %v902 = vunpack.c.l.b16 %v270
    %v903 = vunpack.c.l.b16 %v271
    %v904 = vunpack.c.l.b16 %v272
    %v905 = vunpack.c.l.b16 %v273
    %v906 = vunpack.c.l.b16 %v274
    %v907 = vunpack.c.l.b16 %v275
    %v908 = vunpack.c.l.b16 %v276
    %v909 = vunpack.c.l.b16 %v277
    %v910 = vunpack.c.l.b16 %v278
    %v911 = vunpack.c.l.b16 %v279
    %v912 = vunpack.c.l.b16 %v280
    %v913 = vunpack.c.l.b16 %v281
    %v914 = vunpack.c.l.b16 %v282
    %v915 = vunpack.c.l.b16 %v283
    %v916 = vunpack.c.l.b16 %v284
    %v917 = vunpack.c.l.b16 %v285
    %v918 = vunpack.c.l.b16 %v286
    %v919 = vunpack.c.l.b16 %v287
    %v920 = vunpack.c.l.b16 %v288
    %v921 = vunpack.c.l.b16 %v289
    %v922 = vunpack.c.l.b16 %v290
    %v923 = vunpack.c.l.b16 %v291
    %v924 = vunpack.c.l.b16 %v292
    %v925 = vunpack.c.l.b16 %v293
    %v926 = vunpack.c.l.b16 %v294
    %v927 = vunpack.c.l.b16 %v295
    %v928 = vunpack.c.l.b16 %v296
    %v929 = vunpack.c.l.b16 %v297
    %v930 = vunpack.c.l.b16 %v298
    %v931 = vunpack.c.l.b16 %v299
    %v932 = vunpack.c.l.b16 %v300
    %v933 = vunpack.c.l.b16 %v301
    %v934 = vunpack.c.l.b16 %v302
    %v935 = vunpack.c.l.b16 %v303
    %v936 = vunpack.c.l.b16 %v304
    %v937 = vunpack.c.l.b16 %v305
    %v938 = vunpack.c.l.b16 %v306
    %v939 = vunpack.c.l.b16 %v307
    %v940 = vunpack.c.l.b16 %v308
    %v941 = vunpack.c.l.b16 %v309
    %v942 = vunpack.c.l.b16 %v310
    %v943 = vunpack.c.l.b16 %v311
    %v944 = vunpack.c.l.b16 %v312
    %v945 = vunpack.c.l.b16 %v313
    %v946 = vunpack.c.l.b16 %v314
    %v947 = vunpack.c.l.b16 %v315
    %v948 = vunpack.c.l.b16 %v316
    %v949 = vunpack.c.l.b16 %v317
    %v950 = vunpack.c.l.b16 %v318
    %v951 = vunpack.c.l.b16 %v319
    %v952 = vunpack.c.l.b16 %v320
    %v953 = vunpack.c.l.b16 %v321
    %v954 = vunpack.c.l.b16 %v322
    %v955 = vpack.c.b16 %v686, %v685
    %v956 = vpack.c.b16 %v688, %v687
    %v957 = vpack.c.b16 %v690, %v689
    %v958 = vpack.c.b16 %v692, %v691
    %v959 = vpack.c.b16 %v694, %v693
    %v960 = vpack.c.b16 %v696, %v695
    %v961 = vpack.c.b16 %v698, %v697
    %v962 = vpack.c.b16 %v700, %v699
    %v963 = vpack.c.b16 %v702, %v701
    %v964 = vpack.c.b16 %v704, %v703
    %v965 = vpack.c.b16 %v706, %v705
    %v966 = vpack.c.b16 %v708, %v707
    %v967 = vpack.c.b16 %v710, %v709
    %v968 = vpack.c.b16 %v712, %v711
    %v969 = vpack.c.b16 %v714, %v713
    %v970 = vpack.c.b16 %v716, %v715
    %v971 = vpack.c.b16 %v718, %v717
    %v972 = vpack.c.b16 %v720, %v719
    %v973 = vpack.c.b16 %v722, %v721
    %v974 = vpack.c.b16 %v724, %v723
    %v975 = vpack.c.b16 %v726, %v725
    %v976 = vpack.c.b16 %v728, %v727
    %v977 = vpack.c.b16 %v730, %v729
    %v978 = vpack.c.b16 %v732, %v731
    %v979 = vpack.c.b16 %v734, %v733
    %v980 = vpack.c.b16 %v736, %v735
    %v981 = vpack.c.b16 %v738, %v737
    %v982 = vpack.c.b16 %v740, %v739
    %v983 = vpack.c.b16 %v742, %v741
    %v984 = vpack.c.b16 %v744, %v743
    %v985 = vpack.c.b16 %v746, %v745
    %v986 = vpack.c.b16 %v748, %v747
    %v987 = vpack.c.b16 %v750, %v749
    %v988 = vpack.c.b16 %v752, %v751
    %v989 = vpack.c.b16 %v754, %v753
    %v990 = vpack.c.b16 %v756, %v755
    %v991 = vpack.c.b16 %v758, %v757
    %v992 = vpack.c.b16 %v760, %v759
    %v993 = vpack.c.b16 %v762, %v761
    %v994 = vpack.c.b16 %v764, %v763
    %v995 = vpack.c.b16 %v766, %v765
    %v996 = vpack.c.b16 %v768, %v767
    %v997 = vpack.c.b16 %v770, %v769
    %v998 = vpack.c.b16 %v772, %v771
    %v999 = vpack.c.b16 %v774, %v773
    %v1000 = vpack.c.b16 %v776, %v775
    %v1001 = vpack.c.b16 %v778, %v777
    %v1002 = vpack.c.b16 %v780, %v779
    %v1003 = vpack.c.b16 %v782, %v781
    %v1004 = vpack.c.b16 %v784, %v783
    %v1005 = vpack.c.b16 %v786, %v785
    %v1006 = vpack.c.b16 %v788, %v787
    %v1007 = vpack.c.b16 %v790, %v789
    %v1008 = vpack.c.b16 %v792, %v791
    %v1009 = vpack.c.b16 %v794, %v793
    %v1010 = vpack.c.b16 %v796, %v795
    %v1011 = vpack.c.b16 %v798, %v797
    %v1012 = vpack.c.b16 %v800, %v799
    %v1013 = vpack.c.b16 %v802, %v801
    %v1014 = vpack.c.b16 %v804, %v803
    %v1015 = vpack.c.b16 %v806, %v805
    %v1016 = vpack.c.b16 %v808, %v807
    %v1017 = vpack.c.b16 %v810, %v809
    %v1018 = vpack.c.b16 %v812, %v811
    %v1019 = vpack.c.b16 %v814, %v813
    %v1020 = vpack.c.b16 %v816, %v815
    %v1021 = vpack.c.b16 %v818, %v817
    %v1022 = vpack.c.b16 %v820, %v819
    %v1023 = vpack.c.b16 %v822, %v821
    %v1024 = vpack.c.b16 %v824, %v823
    %v1025 = vpack.c.b16 %v826, %v825
    %v1026 = vpack.c.b16 %v828, %v827
    %v1027 = vpack.c.b16 %v830, %v829
    %v1028 = vpack.c.b16 %v832, %v831
    %v1029 = vpack.c.b16 %v834, %v833
    %v1030 = vpack.c.b16 %v836, %v835
    %v1031 = vpack.c.b16 %v838, %v837
    %v1032 = vpack.c.b16 %v840, %v839
    %v1033 = vpack.c.b16 %v842, %v841
    %v1034 = vpack.c.b16 %v844, %v843
    %v1035 = vpack.c.b16 %v846, %v845
    %v1036 = vpack.c.b16 %v848, %v847
    %v1037 = vpack.c.b16 %v850, %v849
    %v1038 = vpack.c.b16 %v852, %v851
    %v1039 = vpack.c.b16 %v854, %v853
    %v1040 = vpack.c.b16 %v856, %v855
    %v1041 = vpack.c.b16 %v858, %v857
    %v1042 = vpack.c.b16 %v860, %v859
    %v1043 = vpack.c.b16 %v862, %v861
    %v1044 = vpack.c.b16 %v864, %v863
    %v1045 = vpack.c.b16 %v866, %v865
    %v1046 = vpack.c.b16 %v868, %v867
    %v1047 = vpack.c.b16 %v870, %v869
    %v1048 = vpack.c.b16 %v872, %v871
    %v1049 = vpack.c.b16 %v874, %v873
    %v1050 = vpack.c.b16 %v876, %v875
    %v1051 = vpack.c.b16 %v878, %v877
    %v1052 = vpack.c.b16 %v880, %v879
    %v1053 = vpack.c.b16 %v882, %v881
    %v1054 = vpack.c.b16 %v884, %v883
    %v1055 = vpack.c.b16 %v886, %v885
    %v1056 = vpack.c.b16 %v888, %v887
    %v1057 = vpack.c.b16 %v890, %v889
    %v1058 = vpack.c.b16 %v892, %v891
    %v1059 = vpack.c.b16 %v894, %v893
    %v1060 = vpack.c.b16 %v896, %v895
    %v1061 = vpack.c.b16 %v898, %v897
    %v1062 = vpack.c.b16 %v900, %v899
    %v1063 = vpack.c.b16 %v902, %v901
    %v1064 = vpack.c.b16 %v904, %v903
    %v1065 = vpack.c.b16 %v906, %v905
    %v1066 = vpack.c.b16 %v908, %v907
    %v1067 = vpack.c.b16 %v910, %v909
    %v1068 = vpack.c.b16 %v912, %v911
    %v1069 = vpack.c.b16 %v914, %v913
    %v1070 = vpack.c.b16 %v916, %v915
    %v1071 = vpack.c.b16 %v918, %v917
    %v1072 = vpack.c.b16 %v920, %v919
    %v1073 = vpack.c.b16 %v922, %v921
    %v1074 = vpack.c.b16 %v924, %v923
    %v1075 = vpack.c.b16 %v926, %v925
    %v1076 = vpack.c.b16 %v928, %v927
    %v1077 = vpack.c.b16 %v930, %v929
    %v1078 = vpack.c.b16 %v932, %v931
    %v1079 = vpack.c.b16 %v934, %v933
    %v1080 = vpack.c.b16 %v936, %v935
    %v1081 = vpack.c.b16 %v938, %v937
    %v1082 = vpack.c.b16 %v940, %v939
    %v1083 = vpack.c.b16 %v942, %v941
    %v1084 = vpack.c.b16 %v944, %v943
    %v1085 = vpack.c.b16 %v946, %v945
    %v1086 = vpack.c.b16 %v948, %v947
    %v1087 = vpack.c.b16 %v950, %v949
    %v1088 = vpack.c.b16 %v952, %v951
    %v1089 = vpack.c.b16 %v954, %v953
    %vm1225 = vcmask 916480
    %v1227 = vsel %vm1225, %v398, 0
    %1229 = vmatprep.subr.bf16.mxu0 0
    %1230 = vmatpush1.bf16.msra.mxu0 %v955
    %1231 = vmatprep.subr.bf16.mxu0 0
    %1232 = vmatpush1.bf16.msra.mxu0 %v956
    %1233 = vmatprep.subr.bf16.mxu0 0
    %1234 = vmatpush1.bf16.msra.mxu0 %v957
    %1235 = vmatprep.subr.bf16.mxu0 0
    %1236 = vmatpush1.bf16.msra.mxu0 %v958
    %1237 = vmatprep.subr.bf16.mxu0 0
    %1238 = vmatpush1.bf16.msra.mxu0 %v959
    %1239 = vmatprep.subr.bf16.mxu0 0
    %1240 = vmatpush1.bf16.msra.mxu0 %v960
    %1241 = vmatprep.subr.bf16.mxu0 0
    %1242 = vmatpush1.bf16.msra.mxu0 %v961
    %1243 = vmatprep.subr.bf16.mxu0 0
    %1244 = vmatpush1.bf16.msra.mxu0 %v962
    %1245 = vmatprep.subr.bf16.mxu0 0
    %1246 = vmatpush1.bf16.msra.mxu0 %v963
    %1247 = vmatprep.subr.bf16.mxu0 0
    %1248 = vmatpush1.bf16.msra.mxu0 %v964
    %1249 = vmatprep.subr.bf16.mxu0 0
    %1250 = vmatpush1.bf16.msra.mxu0 %v965
    %1251 = vmatprep.subr.bf16.mxu0 0
    %1252 = vmatpush1.bf16.msra.mxu0 %v966
    %1253 = vmatprep.subr.bf16.mxu0 0
    %1254 = vmatpush1.bf16.msra.mxu0 %v967
    %1255 = vmatprep.subr.bf16.mxu0 0
    %1256 = vmatpush1.bf16.msra.mxu0 %v968
    %1257 = vmatprep.subr.bf16.mxu0 0
    %1258 = vmatpush1.bf16.msra.mxu0 %v969
    %1259 = vmatprep.subr.bf16.mxu0 0
    %1260 = vmatpush1.bf16.msra.mxu0 %v970
    %1261 = vmatprep.mubr.bf16.mxu0 %v383
    %1262 = vmatmul.mubr.bf16.gmra.mrb[0].mxu0 %v382
    %v1263 = vpop.f32.mrb[0].mxu0
    %v1264 = vadd.f32 %v328, %v1263
    %v1265 = vpop.f32.mrb[0].mxu0
    %v1266 = vpop.f32.mrb[0].mxu0
    %v1267 = vadd.f32 %v328, %v1266
    %v1268 = vpop.f32.mrb[0].mxu0
    %1269 = vdwg.mxu0
    %1270 = vmatprep.subr.bf16.mxu0 0
    %1271 = vmatpush1.bf16.msra.mxu0 %v971
    %1272 = vmatprep.subr.bf16.mxu0 0
    %1273 = vmatpush1.bf16.msra.mxu0 %v972
    %1274 = vmatprep.subr.bf16.mxu0 0
    %1275 = vmatpush1.bf16.msra.mxu0 %v973
    %1276 = vmatprep.subr.bf16.mxu0 0
    %1277 = vmatpush1.bf16.msra.mxu0 %v974
    %1278 = vmatprep.subr.bf16.mxu0 0
    %1279 = vmatpush1.bf16.msra.mxu0 %v975
    %1280 = vmatprep.subr.bf16.mxu0 0
    %1281 = vmatpush1.bf16.msra.mxu0 %v976
    %1282 = vmatprep.subr.bf16.mxu0 0
    %1283 = vmatpush1.bf16.msra.mxu0 %v977
    %1284 = vmatprep.subr.bf16.mxu0 0
    %1285 = vmatpush1.bf16.msra.mxu0 %v978
    %1286 = vmatprep.subr.bf16.mxu0 0
    %1287 = vmatpush1.bf16.msra.mxu0 %v979
    %1288 = vmatprep.subr.bf16.mxu0 0
    %1289 = vmatpush1.bf16.msra.mxu0 %v980
    %1290 = vmatprep.subr.bf16.mxu0 0
    %1291 = vmatpush1.bf16.msra.mxu0 %v981
    %1292 = vmatprep.subr.bf16.mxu0 0
    %1293 = vmatpush1.bf16.msra.mxu0 %v982
    %1294 = vmatprep.subr.bf16.mxu0 0
    %1295 = vmatpush1.bf16.msra.mxu0 %v983
    %1296 = vmatprep.subr.bf16.mxu0 0
    %1297 = vmatpush1.bf16.msra.mxu0 %v984
    %1298 = vmatprep.subr.bf16.mxu0 0
    %1299 = vmatpush1.bf16.msra.mxu0 %v985
    %1300 = vmatprep.subr.bf16.mxu0 0
    %1301 = vmatpush1.bf16.msra.mxu0 %v986
    %1302 = vmatprep.mubr.bf16.mxu0 %v385
    %1303 = vmatmul.mubr.bf16.gmra.mrb[0].mxu0 %v384
    %v1304 = vpop.f32.mrb[0].mxu0
    %v1305 = vadd.f32 %v1264, %v1304
    %v1306 = vpop.f32.mrb[0].mxu0
    %v1307 = vpop.f32.mrb[0].mxu0
    %v1308 = vadd.f32 %v1267, %v1307
    %v1309 = vpop.f32.mrb[0].mxu0
    %1310 = vdwg.mxu0
    %1311 = vmatprep.subr.bf16.mxu0 0
    %1312 = vmatpush1.bf16.msra.mxu0 %v987
    %1313 = vmatprep.subr.bf16.mxu0 0
    %1314 = vmatpush1.bf16.msra.mxu0 %v988
    %1315 = vmatprep.subr.bf16.mxu0 0
    %1316 = vmatpush1.bf16.msra.mxu0 %v989
    %1317 = vmatprep.subr.bf16.mxu0 0
    %1318 = vmatpush1.bf16.msra.mxu0 %v990
    %1319 = vmatprep.subr.bf16.mxu0 0
    %1320 = vmatpush1.bf16.msra.mxu0 %v991
    %1321 = vmatprep.subr.bf16.mxu0 0
    %1322 = vmatpush1.bf16.msra.mxu0 %v992
    %1323 = vmatprep.subr.bf16.mxu0 0
    %1324 = vmatpush1.bf16.msra.mxu0 %v993
    %1325 = vmatprep.subr.bf16.mxu0 0
    %1326 = vmatpush1.bf16.msra.mxu0 %v994
    %1327 = vmatprep.subr.bf16.mxu0 0
    %1328 = vmatpush1.bf16.msra.mxu0 %v995
    %1329 = vmatprep.subr.bf16.mxu0 0
    %1330 = vmatpush1.bf16.msra.mxu0 %v996
    %1331 = vmatprep.subr.bf16.mxu0 0
    %1332 = vmatpush1.bf16.msra.mxu0 %v997
    %1333 = vmatprep.subr.bf16.mxu0 0
    %1334 = vmatpush1.bf16.msra.mxu0 %v998
    %1335 = vmatprep.subr.bf16.mxu0 0
    %1336 = vmatpush1.bf16.msra.mxu0 %v999
    %1337 = vmatprep.subr.bf16.mxu0 0
    %1338 = vmatpush1.bf16.msra.mxu0 %v1000
    %1339 = vmatprep.subr.bf16.mxu0 0
    %1340 = vmatpush1.bf16.msra.mxu0 %v1001
    %1341 = vmatprep.subr.bf16.mxu0 0
    %1342 = vmatpush1.bf16.msra.mxu0 %v1002
    %1343 = vmatprep.mubr.bf16.mxu0 %v387
    %1344 = vmatmul.mubr.bf16.gmra.mrb[0].mxu0 %v386
    %v1345 = vpop.f32.mrb[0].mxu0
    %v1346 = vadd.f32 %v1305, %v1345
    %v1347 = vpop.f32.mrb[0].mxu0
    %v1348 = vpop.f32.mrb[0].mxu0
    %v1349 = vadd.f32 %v1308, %v1348
    %v1350 = vpop.f32.mrb[0].mxu0
    %1351 = vdwg.mxu0
    %1352 = vmatprep.subr.bf16.mxu0 0
    %1353 = vmatpush1.bf16.msra.mxu0 %v1003
    %1354 = vmatprep.subr.bf16.mxu0 0
    %1355 = vmatpush1.bf16.msra.mxu0 %v1004
    %1356 = vmatprep.subr.bf16.mxu0 0
    %1357 = vmatpush1.bf16.msra.mxu0 %v1005
    %1358 = vmatprep.subr.bf16.mxu0 0
    %1359 = vmatpush1.bf16.msra.mxu0 %v1006
    %1360 = vmatprep.subr.bf16.mxu0 0
    %1361 = vmatpush1.bf16.msra.mxu0 %v1007
    %1362 = vmatprep.subr.bf16.mxu0 0
    %1363 = vmatpush1.bf16.msra.mxu0 %v1008
    %1364 = vmatprep.subr.bf16.mxu0 0
    %1365 = vmatpush1.bf16.msra.mxu0 %v1009
    %1366 = vmatprep.subr.bf16.mxu0 0
    %1367 = vmatpush1.bf16.msra.mxu0 %v1010
    %1368 = vmatprep.subr.bf16.mxu0 0
    %1369 = vmatpush1.bf16.msra.mxu0 %v1011
    %1370 = vmatprep.subr.bf16.mxu0 0
    %1371 = vmatpush1.bf16.msra.mxu0 %v1012
    %1372 = vmatprep.subr.bf16.mxu0 0
    %1373 = vmatpush1.bf16.msra.mxu0 %v1013
    %1374 = vmatprep.subr.bf16.mxu0 0
    %1375 = vmatpush1.bf16.msra.mxu0 %v1014
    %1376 = vmatprep.subr.bf16.mxu0 0
    %1377 = vmatpush1.bf16.msra.mxu0 %v1015
    %1378 = vmatprep.subr.bf16.mxu0 0
    %1379 = vmatpush1.bf16.msra.mxu0 %v1016
    %1380 = vmatprep.subr.bf16.mxu0 0
    %1381 = vmatpush1.bf16.msra.mxu0 %v1017
    %1382 = vmatprep.subr.bf16.mxu0 0
    %1383 = vmatpush1.bf16.msra.mxu0 %v1018
    %1384 = vmatprep.mubr.bf16.mxu0 %v389
    %1385 = vmatmul.mubr.bf16.gmra.mrb[0].mxu0 %v388
    %v1386 = vpop.f32.mrb[0].mxu0
    %v1387 = vadd.f32 %v1346, %v1386
    %v1388 = vpop.f32.mrb[0].mxu0
    %v1389 = vpop.f32.mrb[0].mxu0
    %v1390 = vadd.f32 %v1349, %v1389
    %v1391 = vpop.f32.mrb[0].mxu0
    %1392 = vdwg.mxu0
    %1393 = vmatprep.subr.bf16.mxu0 0
    %1394 = vmatpush1.bf16.msra.mxu0 %v1019
    %1395 = vmatprep.subr.bf16.mxu0 0
    %1396 = vmatpush1.bf16.msra.mxu0 %v1020
    %1397 = vmatprep.subr.bf16.mxu0 0
    %1398 = vmatpush1.bf16.msra.mxu0 %v1021
    %1399 = vmatprep.subr.bf16.mxu0 0
    %1400 = vmatpush1.bf16.msra.mxu0 %v1022
    %1401 = vmatprep.subr.bf16.mxu0 0
    %1402 = vmatpush1.bf16.msra.mxu0 %v1023
    %1403 = vmatprep.subr.bf16.mxu0 0
    %1404 = vmatpush1.bf16.msra.mxu0 %v1024
    %1405 = vmatprep.subr.bf16.mxu0 0
    %1406 = vmatpush1.bf16.msra.mxu0 %v1025
    %1407 = vmatprep.subr.bf16.mxu0 0
    %1408 = vmatpush1.bf16.msra.mxu0 %v1026
    %1409 = vmatprep.subr.bf16.mxu0 0
    %1410 = vmatpush1.bf16.msra.mxu0 %v1027
    %1411 = vmatprep.subr.bf16.mxu0 0
    %1412 = vmatpush1.bf16.msra.mxu0 %v1028
    %1413 = vmatprep.subr.bf16.mxu0 0
    %1414 = vmatpush1.bf16.msra.mxu0 %v1029
    %1415 = vmatprep.subr.bf16.mxu0 0
    %1416 = vmatpush1.bf16.msra.mxu0 %v1030
    %1417 = vmatprep.subr.bf16.mxu0 0
    %1418 = vmatpush1.bf16.msra.mxu0 %v1031
    %1419 = vmatprep.subr.bf16.mxu0 0
    %1420 = vmatpush1.bf16.msra.mxu0 %v1032
    %1421 = vmatprep.subr.bf16.mxu0 0
    %1422 = vmatpush1.bf16.msra.mxu0 %v1033
    %1423 = vmatprep.subr.bf16.mxu0 0
    %1424 = vmatpush1.bf16.msra.mxu0 %v1034
    %1425 = vmatprep.mubr.bf16.mxu0 %v391
    %1426 = vmatmul.mubr.bf16.gmra.mrb[0].mxu0 %v390
    %v1427 = vpop.f32.mrb[0].mxu0
    %v1428 = vadd.f32 %v1387, %v1427
    %v1429 = vpop.f32.mrb[0].mxu0
    %v1430 = vpop.f32.mrb[0].mxu0
    %v1431 = vadd.f32 %v1390, %v1430
    %v1432 = vpop.f32.mrb[0].mxu0
    %1433 = vdwg.mxu0
    %1434 = vmatprep.subr.bf16.mxu0 0
    %1435 = vmatpush1.bf16.msra.mxu0 %v1035
    %1436 = vmatprep.subr.bf16.mxu0 0
    %1437 = vmatpush1.bf16.msra.mxu0 %v1036
    %1438 = vmatprep.subr.bf16.mxu0 0
    %1439 = vmatpush1.bf16.msra.mxu0 %v1037
    %1440 = vmatprep.subr.bf16.mxu0 0
    %1441 = vmatpush1.bf16.msra.mxu0 %v1038
    %1442 = vmatprep.subr.bf16.mxu0 0
    %1443 = vmatpush1.bf16.msra.mxu0 %v1039
    %1444 = vmatprep.subr.bf16.mxu0 0
    %1445 = vmatpush1.bf16.msra.mxu0 %v1040
    %1446 = vmatprep.subr.bf16.mxu0 0
    %1447 = vmatpush1.bf16.msra.mxu0 %v1041
    %1448 = vmatprep.subr.bf16.mxu0 0
    %1449 = vmatpush1.bf16.msra.mxu0 %v1042
    %1450 = vmatprep.subr.bf16.mxu0 0
    %1451 = vmatpush1.bf16.msra.mxu0 %v1043
    %1452 = vmatprep.subr.bf16.mxu0 0
    %1453 = vmatpush1.bf16.msra.mxu0 %v1044
    %1454 = vmatprep.subr.bf16.mxu0 0
    %1455 = vmatpush1.bf16.msra.mxu0 %v1045
    %1456 = vmatprep.subr.bf16.mxu0 0
    %1457 = vmatpush1.bf16.msra.mxu0 %v1046
    %1458 = vmatprep.subr.bf16.mxu0 0
    %1459 = vmatpush1.bf16.msra.mxu0 %v1047
    %1460 = vmatprep.subr.bf16.mxu0 0
    %1461 = vmatpush1.bf16.msra.mxu0 %v1048
    %1462 = vmatprep.subr.bf16.mxu0 0
    %1463 = vmatpush1.bf16.msra.mxu0 %v1049
    %1464 = vmatprep.subr.bf16.mxu0 0
    %1465 = vmatpush1.bf16.msra.mxu0 %v1050
    %1466 = vmatprep.mubr.bf16.mxu0 %v393
    %1467 = vmatmul.mubr.bf16.gmra.mrb[0].mxu0 %v392
    %v1468 = vpop.f32.mrb[0].mxu0
    %v1469 = vadd.f32 %v1428, %v1468
    %v1470 = vpop.f32.mrb[0].mxu0
    %v1471 = vpop.f32.mrb[0].mxu0
    %v1472 = vadd.f32 %v1431, %v1471
    %v1473 = vpop.f32.mrb[0].mxu0
    %1474 = vdwg.mxu0
    %1475 = vmatprep.subr.bf16.mxu0 0
    %1476 = vmatpush1.bf16.msra.mxu0 %v1051
    %1477 = vmatprep.subr.bf16.mxu0 0
    %1478 = vmatpush1.bf16.msra.mxu0 %v1052
    %1479 = vmatprep.subr.bf16.mxu0 0
    %1480 = vmatpush1.bf16.msra.mxu0 %v1053
    %1481 = vmatprep.subr.bf16.mxu0 0
    %1482 = vmatpush1.bf16.msra.mxu0 %v1054
    %1483 = vmatprep.subr.bf16.mxu0 0
    %1484 = vmatpush1.bf16.msra.mxu0 %v1055
    %1485 = vmatprep.subr.bf16.mxu0 0
    %1486 = vmatpush1.bf16.msra.mxu0 %v1056
    %1487 = vmatprep.subr.bf16.mxu0 0
    %1488 = vmatpush1.bf16.msra.mxu0 %v1057
    %1489 = vmatprep.subr.bf16.mxu0 0
    %1490 = vmatpush1.bf16.msra.mxu0 %v1058
    %1491 = vmatprep.subr.bf16.mxu0 0
    %1492 = vmatpush1.bf16.msra.mxu0 %v1059
    %1493 = vmatprep.subr.bf16.mxu0 0
    %1494 = vmatpush1.bf16.msra.mxu0 %v1060
    %1495 = vmatprep.subr.bf16.mxu0 0
    %1496 = vmatpush1.bf16.msra.mxu0 %v1061
    %1497 = vmatprep.subr.bf16.mxu0 0
    %1498 = vmatpush1.bf16.msra.mxu0 %v1062
    %1499 = vmatprep.subr.bf16.mxu0 0
    %1500 = vmatpush1.bf16.msra.mxu0 %v1063
    %1501 = vmatprep.subr.bf16.mxu0 0
    %1502 = vmatpush1.bf16.msra.mxu0 %v1064
    %1503 = vmatprep.subr.bf16.mxu0 0
    %1504 = vmatpush1.bf16.msra.mxu0 %v1065
    %1505 = vmatprep.subr.bf16.mxu0 0
    %1506 = vmatpush1.bf16.msra.mxu0 %v1066
    %1507 = vmatprep.mubr.bf16.mxu0 %v395
    %1508 = vmatmul.mubr.bf16.gmra.mrb[0].mxu0 %v394
    %v1509 = vpop.f32.mrb[0].mxu0
    %v1510 = vadd.f32 %v1469, %v1509
    %v1511 = vpop.f32.mrb[0].mxu0
    %v1512 = vpop.f32.mrb[0].mxu0
    %v1513 = vadd.f32 %v1472, %v1512
    %v1514 = vpop.f32.mrb[0].mxu0
    %1515 = vdwg.mxu0
    %1516 = vmatprep.subr.bf16.mxu0 0
    %1517 = vmatpush1.bf16.msra.mxu0 %v1067
    %1518 = vmatprep.subr.bf16.mxu0 0
    %1519 = vmatpush1.bf16.msra.mxu0 %v1068
    %1520 = vmatprep.subr.bf16.mxu0 0
    %1521 = vmatpush1.bf16.msra.mxu0 %v1069
    %1522 = vmatprep.subr.bf16.mxu0 0
    %1523 = vmatpush1.bf16.msra.mxu0 %v1070
    %1524 = vmatprep.subr.bf16.mxu0 0
    %1525 = vmatpush1.bf16.msra.mxu0 %v1071
    %1526 = vmatprep.subr.bf16.mxu0 0
    %1527 = vmatpush1.bf16.msra.mxu0 %v1072
    %1528 = vmatprep.subr.bf16.mxu0 0
    %1529 = vmatpush1.bf16.msra.mxu0 %v1073
    %1530 = vmatprep.subr.bf16.mxu0 0
    %1531 = vmatpush1.bf16.msra.mxu0 %v1074
    %1532 = vmatprep.subr.bf16.mxu0 0
    %1533 = vmatpush1.bf16.msra.mxu0 %v1075
    %1534 = vmatprep.subr.bf16.mxu0 0
    %1535 = vmatpush1.bf16.msra.mxu0 %v1076
    %1536 = vmatprep.subr.bf16.mxu0 0
    %1537 = vmatpush1.bf16.msra.mxu0 %v1077
    %1538 = vmatprep.subr.bf16.mxu0 0
    %1539 = vmatpush1.bf16.msra.mxu0 %v1078
    %1540 = vmatprep.subr.bf16.mxu0 0
    %1541 = vmatpush1.bf16.msra.mxu0 %v1079
    %1542 = vmatprep.subr.bf16.mxu0 0
    %1543 = vmatpush1.bf16.msra.mxu0 %v1080
    %1544 = vmatprep.subr.bf16.mxu0 0
    %1545 = vmatpush1.bf16.msra.mxu0 %v1081
    %1546 = vmatprep.subr.bf16.mxu0 0
    %1547 = vmatpush1.bf16.msra.mxu0 %v1082
    %1548 = vmatprep.mubr.bf16.mxu0 %v397
    %1549 = vmatmul.mubr.bf16.gmra.mrb[0].mxu0 %v396
    %v1550 = vpop.f32.mrb[0].mxu0
    %v1551 = vadd.f32 %v1510, %v1550
    %v1552 = vpop.f32.mrb[0].mxu0
    %v1553 = vpop.f32.mrb[0].mxu0
    %v1554 = vadd.f32 %v1513, %v1553
    %v1555 = vpop.f32.mrb[0].mxu0
    %1556 = vdwg.mxu0
    %1557 = vmatprep.subr.bf16.mxu0 0
    %1558 = vmatpush1.bf16.msra.mxu0 %v1083
    %1559 = vmatprep.subr.bf16.mxu0 0
    %1560 = vmatpush1.bf16.msra.mxu0 %v1084
    %1561 = vmatprep.subr.bf16.mxu0 0
    %1562 = vmatpush1.bf16.msra.mxu0 %v1085
    %1563 = vmatprep.subr.bf16.mxu0 0
    %1564 = vmatpush1.bf16.msra.mxu0 %v1086
    %1565 = vmatprep.subr.bf16.mxu0 0
    %1566 = vmatpush1.bf16.msra.mxu0 %v1087
    %1567 = vmatprep.subr.bf16.mxu0 0
    %1568 = vmatpush1.bf16.msra.mxu0 %v1088
    %1569 = vmatprep.subr.bf16.mxu0 0
    %1570 = vmatpush1.bf16.msra.mxu0 %v1089
    %1571 = vmatprep.subr.bf16.mxu0 0
    %1572 = vmatpush1.bf16.msra.mxu0 0
    %1573 = vmatprep.subr.bf16.mxu0 0
    %1574 = vmatpush1.bf16.msra.mxu0 0
    %1575 = vmatprep.subr.bf16.mxu0 0
    %1576 = vmatpush1.bf16.msra.mxu0 0
    %1577 = vmatprep.subr.bf16.mxu0 0
    %1578 = vmatpush1.bf16.msra.mxu0 0
    %1579 = vmatprep.subr.bf16.mxu0 0
    %1580 = vmatpush1.bf16.msra.mxu0 0
    %1581 = vmatprep.subr.bf16.mxu0 0
    %1582 = vmatpush1.bf16.msra.mxu0 0
    %1583 = vmatprep.subr.bf16.mxu0 0
    %1584 = vmatpush1.bf16.msra.mxu0 0
    %1585 = vmatprep.subr.bf16.mxu0 0
    %1586 = vmatpush1.bf16.msra.mxu0 0
    %1587 = vmatprep.subr.bf16.mxu0 0
    %1588 = vmatpush1.bf16.msra.mxu0 0
    %1589 = vmatprep.mubr.bf16.mxu0 0
    %1590 = vmatmul.mubr.bf16.gmra.mrb[0].mxu0 %v1227
    %v1591 = vpop.f32.mrb[0].mxu0
    %v1592 = vadd.f32 %v1551, %v1591
    %v1593 = vpop.f32.mrb[0].mxu0
    %v1594 = vpop.f32.mrb[0].mxu0
    %v1595 = vadd.f32 %v1554, %v1594
    %v1596 = vpop.f32.mrb[0].mxu0
    %1597 = vdwg.mxu0
    %v1598 = vmax.f32 %v1592, 0.0
    %v1599 = vmax.f32 %v1595, 0.0
    %v1600 = vld [vmem:[%s3] sm:$0xff]
    %v1601 = vld [vmem:[%s3 + $0x8] sm:$0xff]
    %v1602 = vld [vmem:[%s3 + $0x10] sm:$0xff]
    %v1603 = vld [vmem:[%s3 + $0x18] sm:$0xff]
    %v1604 = vld [vmem:[%s3 + $0x20] sm:$0xff]
    %v1605 = vld [vmem:[%s3 + $0x28] sm:$0xff]
    %v1606 = vld [vmem:[%s3 + $0x30] sm:$0xff]
    %v1607 = vld [vmem:[%s3 + $0x38] sm:$0xff]
    %v1608 = vld [vmem:[%s3 + $0x40] sm:$0xff]
    %v1609 = vld [vmem:[%s3 + $0x48] sm:$0xff]
    %v1610 = vld [vmem:[%s3 + $0x50] sm:$0xff]
    %v1611 = vld [vmem:[%s3 + $0x58] sm:$0xff]
    %v1612 = vld [vmem:[%s3 + $0x60] sm:$0xff]
    %v1613 = vld [vmem:[%s3 + $0x68] sm:$0xff]
    %v1614 = vld [vmem:[%s3 + $0x70] sm:$0xff]
    %v1615 = vld [vmem:[%s3 + $0x78] sm:$0xff]
    %v1616 = vld [vmem:[%s3 + $0x80] sm:$0xff]
    %v1617 = vld [vmem:[%s3 + $0x88] sm:$0xff]
    %v1618 = vld [vmem:[%s3 + $0x90] sm:$0xff]
    %v1619 = vld [vmem:[%s3 + $0x98] sm:$0xff]
    %v1620 = vld [vmem:[%s3 + $0xa0] sm:$0xff]
    %v1621 = vld [vmem:[%s3 + $0xa8] sm:$0xff]
    %v1622 = vld [vmem:[%s3 + $0xb0] sm:$0xff]
    %v1623 = vld [vmem:[%s3 + $0xb8] sm:$0xff]
    %v1624 = vld [vmem:[%s3 + $0xc0] sm:$0xff]
    %v1625 = vld [vmem:[%s3 + $0xc8] sm:$0xff]
    %v1626 = vld [vmem:[%s3 + $0xd0] sm:$0xff]
    %v1627 = vld [vmem:[%s3 + $0xd8] sm:$0xff]
    %v1628 = vld [vmem:[%s3 + $0xe0] sm:$0xff]
    %v1629 = vld [vmem:[%s3 + $0xe8] sm:$0xff]
    %v1630 = vld [vmem:[%s3 + $0xf0] sm:$0xff]
    %v1631 = vld [vmem:[%s3 + $0xf8] sm:$0xff]
    %v1632 = vld [vmem:[%s4] sm:$0x3]
    %v1634 = vlaneseq
    %v1635 = vshrl.u32 %v1634, 7
    %v1636 = vsub.s32 0, %v1635
    %v1637 = vrot.slane %v1632, %v1636
    %v1638 = vlaneseq
    %v1639 = vshrl.u32 %v1638, 7
    %v1640 = vsub.s32 1, %v1639
    %v1641 = vrot.slane %v1632, %v1640
    %1644 = vmatprep.subr.mxu0 %v1601
    %1645 = vmatpush1.msra.mxu0 %v1600
    %1646 = vmatprep.subr.mxu0 %v1603
    %1647 = vmatpush1.msra.mxu0 %v1602
    %1648 = vmatprep.subr.mxu0 %v1605
    %1649 = vmatpush1.msra.mxu0 %v1604
    %1650 = vmatprep.subr.mxu0 %v1607
    %1651 = vmatpush1.msra.mxu0 %v1606
    %1652 = vmatprep.subr.mxu0 %v1609
    %1653 = vmatpush1.msra.mxu0 %v1608
    %1654 = vmatprep.subr.mxu0 %v1611
    %1655 = vmatpush1.msra.mxu0 %v1610
    %1656 = vmatprep.subr.mxu0 %v1613
    %1657 = vmatpush1.msra.mxu0 %v1612
    %1658 = vmatprep.subr.mxu0 %v1615
    %1659 = vmatpush1.msra.mxu0 %v1614
    %1660 = vmatprep.subr.mxu0 %v1617
    %1661 = vmatpush1.msra.mxu0 %v1616
    %1662 = vmatprep.subr.mxu0 %v1619
    %1663 = vmatpush1.msra.mxu0 %v1618
    %1664 = vmatprep.subr.mxu0 %v1621
    %1665 = vmatpush1.msra.mxu0 %v1620
    %1666 = vmatprep.subr.mxu0 %v1623
    %1667 = vmatpush1.msra.mxu0 %v1622
    %1668 = vmatprep.subr.mxu0 %v1625
    %1669 = vmatpush1.msra.mxu0 %v1624
    %1670 = vmatprep.subr.mxu0 %v1627
    %1671 = vmatpush1.msra.mxu0 %v1626
    %1672 = vmatprep.subr.mxu0 %v1629
    %1673 = vmatpush1.msra.mxu0 %v1628
    %1674 = vmatprep.subr.mxu0 %v1631
    %1675 = vmatpush1.msra.mxu0 %v1630
    %1676 = vmatprep.subr.mxu0 0.0
    %1677 = vmatpush1.msra.mxu0 0.0
    %1678 = vmatprep.subr.mxu0 0.0
    %1679 = vmatpush1.msra.mxu0 0.0
    %1680 = vmatprep.subr.mxu0 0.0
    %1681 = vmatpush1.msra.mxu0 0.0
    %1682 = vmatprep.subr.mxu0 0.0
    %1683 = vmatpush1.msra.mxu0 0.0
    %1684 = vmatprep.subr.mxu0 0.0
    %1685 = vmatpush1.msra.mxu0 0.0
    %1686 = vmatprep.subr.mxu0 0.0
    %1687 = vmatpush1.msra.mxu0 0.0
    %1688 = vmatprep.subr.mxu0 0.0
    %1689 = vmatpush1.msra.mxu0 0.0
    %1690 = vmatprep.subr.mxu0 0.0
    %1691 = vmatpush1.msra.mxu0 0.0
    %1692 = vmatprep.subr.mxu0 0.0
    %1693 = vmatpush1.msra.mxu0 0.0
    %1694 = vmatprep.subr.mxu0 0.0
    %1695 = vmatpush1.msra.mxu0 0.0
    %1696 = vmatprep.subr.mxu0 0.0
    %1697 = vmatpush1.msra.mxu0 0.0
    %1698 = vmatprep.subr.mxu0 0.0
    %1699 = vmatpush1.msra.mxu0 0.0
    %1700 = vmatprep.subr.mxu0 0.0
    %1701 = vmatpush1.msra.mxu0 0.0
    %1702 = vmatprep.subr.mxu0 0.0
    %1703 = vmatpush1.msra.mxu0 0.0
    %1704 = vmatprep.subr.mxu0 0.0
    %1705 = vmatpush1.msra.mxu0 0.0
    %1706 = vmatprep.subr.mxu0 0.0
    %1707 = vmatpush1.msra.mxu0 0.0
    %1708 = vmatprep.mubr.f32.mxu0 0.0
    %1709 = vmatmul.mubr.f32.gmra.mrb[0].mxu0 %v1598
    %v1710 = vpop.f32.mrb[0].mxu0
    %v1711 = vadd.f32 %v1637, %v1710
    %v1712 = vpop.f32.mrb[0].mxu0
    %v1713 = vadd.f32 %v1641, %v1712
    %1714 = vmatprep.mubr.f32.mxu0 0.0
    %1715 = vmatmul.mubr.f32.gmra.mrb[0].mxu0 %v1599
    %v1716 = vpop.f32.mrb[0].mxu0
    %v1717 = vadd.f32 %v1637, %v1716
    %v1718 = vpop.f32.mrb[0].mxu0
    %v1719 = vadd.f32 %v1641, %v1718
    %1720 = vdwg.mxu0
    %v1721 = vmax.f32 %v1711, 0.0
    %v1722 = vmax.f32 %v1713, 0.0
    %v1723 = vmax.f32 %v1717, 0.0
    %v1724 = vmax.f32 %v1719, 0.0
    %1725 = vst [vmem:[%s5] sm:$0xff] %v1721
    %1726 = vst [vmem:[%s5 + $0x8] sm:$0xff] %v1722
    %1727 = vst [vmem:[%s5 + $0x10] sm:$0xff] %v1723
    %1728 = vst [vmem:[%s5 + $0x18] sm:$0xff] %v1724
    // Predicated region
    $region26: #{forward.1} parent=1 // pred_check
      _
    $region27: #{forward.1} parent=1 // pred_check_branch
      %1730 = sbr.rel (0) target = $region29
    $region28: #{forward.1} parent=1 // pred_region
      _
    $region29: #{forward.1} parent=1 // pred_fallthru
      _
    // Predicated region
    $region30: #{forward.1} parent=1 // pred_check
      _
    $region31: #{forward.1} parent=1 // pred_check_branch
      %1732 = sbr.rel (0) target = $region33
    $region32: #{forward.1} parent=1 // pred_region
      _
    $region33: #{forward.1} parent=1 // pred_fallthru
      _
    %1733 = vsyncpa [#allocation3], 1

</llo_original>
